<compile_context>
chip_gen: v7x
topology: tpu7x:2x2x1
jax: 0.10.0
libtpu: 0.0.40
codegen_flags: <defaults>
</compile_context>

<pallas_src>
import jax
import jax.numpy as jnp
from jax.experimental import pallas as pl
from jax.experimental.pallas import tpu as pltpu


# ----------------------------------------------------------------------------
# Fused Pallas kernel: whole module, single invocation, everything in VMEM.
# Operands: x0 (H0, N*W0*C0)=(16,128), x1 (H1, N*W1*C1)=(8,128),
#           w (16,128,128) packed weight stack, b (8,128) packed bias rows.
# ----------------------------------------------------------------------------
def _fused_hr_kernel(x0_ref, x1_ref, w_ref, b_ref, y0_ref, y1_ref):
    f32 = jnp.float32
    H0, L = x0_ref.shape          # (16, 128)
    H1, _ = x1_ref.shape          # (8, 128)

    x0 = x0_ref[...].astype(f32)
    x1 = x1_ref[...].astype(f32)
    B = b_ref[...]                # (8, 128): bias rows, lane = n*W*C + w*C + c

    def rows(shape):
        return jax.lax.broadcasted_iota(jnp.int32, shape, 0)

    def conv3x3(x, wi, bias_row, residual=None):
        # 3x3 pad-1 conv + folded BN as three accumulating K=128, N=128 dots.
        # Row shifts via sublane roll + boundary mask (no concat copies).
        H = x.shape[0]
        r = rows(x.shape)
        up = jnp.where(r == 0, 0.0, pltpu.roll(x, 1, axis=0))          # x[h-1]
        dn = jnp.where(r == H - 1, 0.0, pltpu.roll(x, H - 1, axis=0))  # x[h+1]
        out = (jnp.dot(up, w_ref[wi], preferred_element_type=f32)
               + jnp.dot(x, w_ref[wi + 1], preferred_element_type=f32)
               + jnp.dot(dn, w_ref[wi + 2], preferred_element_type=f32)
               + bias_row)
        if residual is not None:
            out = out + residual
        return jnp.maximum(out, 0.0)

    # ----------------- branches: one BasicBlock each -----------------
    x0b = conv3x3(conv3x3(x0, 0, B[0:1, :]), 3, B[1:2, :], residual=x0)
    x1b = conv3x3(conv3x3(x1, 6, B[2:3, :]), 9, B[3:4, :], residual=x1)

    # ---- fuse i=0: y0 = relu(x0b + up2x(BN(conv1x1(x1b)))) ----
    # w[12] folds the 1x1 conv, BN scale and the nearest 2x WIDTH upsample;
    # the HEIGHT upsample duplicates each row of the (H1,128) result.
    t = jnp.dot(x1b, w_ref[12], preferred_element_type=f32) + B[4:5, :]
    t_up = jnp.broadcast_to(t.reshape(H1, 1, L), (H1, 2, L)).reshape(H0, L)
    y0_ref[...] = jnp.maximum(x0b + t_up, 0.0).astype(y0_ref.dtype)

    # ---- fuse i=1: y1 = relu(BN(conv1x1(dw3x3_s2(x0b))) + x1b) ----
    # Output row h needs x0b rows 2h-1 / 2h / 2h+1; the width phase selection,
    # depthwise taps, 1x1 conv and BN scale are folded into w[13..15].
    x0s = x0b.reshape(H1, 2, L)
    ev = x0s[:, 0, :]                                                  # rows 2h
    od = x0s[:, 1, :]                                                  # rows 2h+1
    rm = jnp.where(rows((H1, L)) == 0, 0.0, pltpu.roll(od, 1, axis=0))  # rows 2h-1
    d = (jnp.dot(rm, w_ref[13], preferred_element_type=f32)
         + jnp.dot(ev, w_ref[14], preferred_element_type=f32)
         + jnp.dot(od, w_ref[15], preferred_element_type=f32)
         + B[5:6, :])
    y1_ref[...] = jnp.maximum(d + x1b, 0.0).astype(y1_ref.dtype)


# ----------------------------------------------------------------------------
# Weight packing (once, outside the kernel): fold BN scale + spatial padding +
# upsample / stride-2 selection + batch block-diagonal into matmul weights.
# ----------------------------------------------------------------------------
def _conv3x3_kh(w, scale, Wsp, kh):
    """One kh tap of a 3x3 pad-1 conv (+BN scale) -> (Wsp*Cin, Wsp*Cout)."""
    Cout = w.shape[3]
    wf = (w * scale[None, None, None, :]).astype(jnp.float32)
    m = jnp.zeros((Wsp * w.shape[2], Wsp * Cout), jnp.float32)
    for kw in range(3):
        shift = jnp.eye(Wsp, k=1 - kw, dtype=jnp.float32)   # w_in = w_out + kw - 1
        m = m + jnp.kron(shift, wf[kh, kw])
    return m


def _fuse01(w, scale, Wsp):
    """1x1 conv (Cin->Cout) + BN scale + nearest 2x WIDTH upsample."""
    Cin, Cout = w.shape[2], w.shape[3]
    wf = (w.reshape(Cin, Cout) * scale[None, :]).astype(jnp.float32)
    up = jnp.repeat(jnp.eye(Wsp, dtype=jnp.float32), 2, axis=1)   # (Wsp, 2*Wsp)
    return jnp.kron(up, wf)


def _fuse10_kh(dw, w1x1, scale, Win, Wout, kh):
    """One kh tap of: depthwise 3x3 stride-2 pad-1 + 1x1 conv + BN scale."""
    Cin = dw.shape[-1]
    Cout = w1x1.shape[-1]
    wf = (w1x1.reshape(Cin, Cout) * scale[None, :]).astype(jnp.float32)
    m = jnp.zeros((Win * Cin, Wout * Cout), jnp.float32)
    for kw in range(3):
        cols = 2 * jnp.arange(Wout) + kw - 1                     # input width idx
        valid = ((cols >= 0) & (cols < Win)).astype(jnp.float32)
        sel = jnp.zeros((Win, Wout), jnp.float32).at[
            jnp.clip(cols, 0, Win - 1), jnp.arange(Wout)].set(valid)
        tap = dw[kh, kw][:, None] * wf                           # (Cin, Cout)
        m = m + jnp.kron(sel, tap)
    return m


def _batch2(m):
    """Duplicate a per-sample (64,64) map block-diagonally over the 2 batch lanes."""
    return jnp.kron(jnp.eye(2, dtype=jnp.float32), m)            # (128, 128)


def _bias_lane(b, Wsp, n=2):
    """Per-channel bias -> per-lane row for the (H, n*Wsp*C) layout."""
    return jnp.tile(b.astype(jnp.float32), n * Wsp)              # (128,)


def pack_params(p):
    b0, b1 = p["branch0"], p["branch1"]
    mats = []
    for kh in range(3):
        mats.append(_batch2(_conv3x3_kh(b0["w1"], b0["s1"], 16, kh)))   # 0..2
    for kh in range(3):
        mats.append(_batch2(_conv3x3_kh(b0["w2"], b0["s2"], 16, kh)))   # 3..5
    for kh in range(3):
        mats.append(_batch2(_conv3x3_kh(b1["w1"], b1["s1"], 8, kh)))    # 6..8
    for kh in range(3):
        mats.append(_batch2(_conv3x3_kh(b1["w2"], b1["s2"], 8, kh)))    # 9..11
    mats.append(_batch2(_fuse01(p["f01_w"], p["f01_s"], 8)))            # 12
    for kh in range(3):
        mats.append(_batch2(_fuse10_kh(p["f10_dw"], p["f10_w"],
                                       p["f10_s"], 16, 8, kh)))         # 13..15
    w_stack = jnp.stack(mats, axis=0)                                   # (16,128,128)

    zeros = jnp.zeros((128,), jnp.float32)
    b_stack = jnp.stack([
        _bias_lane(b0["b1"], 16), _bias_lane(b0["b2"], 16),
        _bias_lane(b1["b1"], 8),  _bias_lane(b1["b2"], 8),
        _bias_lane(p["f01_b"], 16), _bias_lane(p["f10_b"], 8),
        zeros, zeros], axis=0)                                           # (8,128)
    return dict(w=w_stack, b=b_stack)


# ----------------------------------------------------------------------------
# Module forward
# ----------------------------------------------------------------------------
@jax.jit
def hr_module_forward_packed(x0p, x1p, pk):
    """Production path: activations stay in the packed (H, N*W*C) lane layout."""
    H0, L0 = x0p.shape
    H1, L1 = x1p.shape
    return pl.pallas_call(
        _fused_hr_kernel,
        out_shape=(jax.ShapeDtypeStruct((H0, L0), x0p.dtype),
                   jax.ShapeDtypeStruct((H1, L1), x1p.dtype)),
    )(x0p, x1p, pk["w"], pk["b"])


@jax.jit
def hr_module_forward(x0_nchw, x1_nchw, pk):
    """Convenience wrapper with PyTorch-convention NCHW I/O (layout glue lives
    only here; stacked HR modules should chain hr_module_forward_packed)."""
    N, C0, H0, W0 = x0_nchw.shape
    _, C1, H1, W1 = x1_nchw.shape
    x0p = jnp.transpose(x0_nchw, (2, 0, 3, 1)).reshape(H0, N * W0 * C0)
    x1p = jnp.transpose(x1_nchw, (2, 0, 3, 1)).reshape(H1, N * W1 * C1)
    y0p, y1p = hr_module_forward_packed(x0p, x1p, pk)
    y0 = jnp.transpose(y0p.reshape(H0, N, W0, C0), (1, 3, 0, 2))
    y1 = jnp.transpose(y1p.reshape(H1, N, W1, C1), (1, 3, 0, 2))
    return y0, y1


# ----------------------------------------------------------------------------
# Pure-JAX reference (correctness sanity check)
# ----------------------------------------------------------------------------
def _ref_conv(x, w, stride=1, pad=0, groups=1):
    return jax.lax.conv_general_dilated(
        x, w, (stride, stride), [(pad, pad), (pad, pad)],
        dimension_numbers=("NHWC", "HWIO", "NHWC"),
        feature_group_count=groups)


def _ref_basic_block(x, p):
    out = _ref_conv(x, p["w1"], pad=1) * p["s1"] + p["b1"]
    out = jnp.maximum(out, 0.0)
    out = _ref_conv(out, p["w2"], pad=1) * p["s2"] + p["b2"]
    return jnp.maximum(out + x, 0.0)


def hr_module_forward_ref(x0_nchw, x1_nchw, p):
    x0 = jnp.transpose(x0_nchw, (0, 2, 3, 1))
    x1 = jnp.transpose(x1_nchw, (0, 2, 3, 1))
    x0 = _ref_basic_block(x0, p["branch0"])
    x1 = _ref_basic_block(x1, p["branch1"])

    t = _ref_conv(x1, p["f01_w"]) * p["f01_s"] + p["f01_b"]
    t = jnp.repeat(jnp.repeat(t, 2, axis=1), 2, axis=2)
    y0 = jnp.maximum(x0 + t, 0.0)

    C = x0.shape[-1]
    d = _ref_conv(x0, p["f10_dw"].reshape(3, 3, 1, C), stride=2, pad=1, groups=C)
    d = _ref_conv(d, p["f10_w"]) * p["f10_s"] + p["f10_b"]
    y1 = jnp.maximum(d + x1, 0.0)

    return jnp.transpose(y0, (0, 3, 1, 2)), jnp.transpose(y1, (0, 3, 1, 2))


# ----------------------------------------------------------------------------
# Deterministic parameter init
# ----------------------------------------------------------------------------
def init_params(key):
    keys = iter(jax.random.split(key, 64))

    def conv_w(shape):
        return 0.1 * jax.random.normal(next(keys), shape, jnp.float32)

    def bn(c):
        gamma = 1.0 + 0.1 * jax.random.normal(next(keys), (c,), jnp.float32)
        beta = 0.1 * jax.random.normal(next(keys), (c,), jnp.float32)
        mean = 0.1 * jax.random.normal(next(keys), (c,), jnp.float32)
        var = jnp.abs(jax.random.normal(next(keys), (c,), jnp.float32)) + 0.5
        scale = gamma / jnp.sqrt(var + 1e-5)
        bias = beta - mean * scale
        return scale, bias

    def branch(c):
        s1, b1 = bn(c)
        s2, b2 = bn(c)
        return dict(w1=conv_w((3, 3, c, c)), s1=s1, b1=b1,
                    w2=conv_w((3, 3, c, c)), s2=s2, b2=b2)

    p = {"branch0": branch(4), "branch1": branch(8)}
    # fuse[0][1]: conv1x1 (8->4) + BN(4) (+ nearest upsample x2)
    s, b = bn(4)
    p.update(f01_w=conv_w((1, 1, 8, 4)), f01_s=s, f01_b=b)
    # fuse[1][0]: dw conv3x3 s2 groups=4 (4->4) -> conv1x1 (4->8) + BN(8)
    s, b = bn(8)
    p.update(f10_dw=conv_w((3, 3, 4)), f10_w=conv_w((1, 1, 4, 8)), f10_s=s, f10_b=b)
    return p


if __name__ == "__main__":
    key = jax.random.PRNGKey(0)
    kp, kx0, kx1 = jax.random.split(key, 3)
    params = init_params(kp)
    packed = pack_params(params)      # BN folding + block-matrix packing, once

    # PyTorch-convention NCHW inputs: branch0 (N,4,16,16), branch1 (N,8,8,8)
    x0 = jax.random.normal(kx0, (2, 4, 16, 16), jnp.float32)
    x1 = jax.random.normal(kx1, (2, 8, 8, 8), jnp.float32)

    y0, y1 = hr_module_forward(x0, x1, packed)
    y0 = jax.block_until_ready(y0)
    y1 = jax.block_until_ready(y1)

    r0, r1 = hr_module_forward_ref(x0, x1, params)
    assert y0.shape == (2, 4, 16, 16) and y1.shape == (2, 8, 8, 8)
    assert jnp.allclose(y0, r0, rtol=1e-4, atol=1e-4)
    assert jnp.allclose(y1, r1, rtol=1e-4, atol=1e-4)

    print("KERNEL_OK")
</pallas_src>

<mosaic_0001>
module attributes {stable_mosaic.version = 11 : i64} {
  func.func @_fused_hr_kernel(%arg0: memref<16x128xf32, #tpu.memory_space<vmem>>, %arg1: memref<8x128xf32, #tpu.memory_space<vmem>>, %arg2: memref<16x128x128xf32, #tpu.memory_space<vmem>>, %arg3: memref<8x128xf32, #tpu.memory_space<vmem>>, %arg4: memref<16x128xf32, #tpu.memory_space<vmem>>, %arg5: memref<8x128xf32, #tpu.memory_space<vmem>>) attributes {dimension_semantics = [], scalar_prefetch = 0 : i64, scratch_operands = 0 : i64, tpu.core_type = #tpu.core_type<tc>} {
    %c0 = arith.constant 0 : index
    %c0_0 = arith.constant 0 : index
    %0 = vector.load %arg0[%c0, %c0_0] : memref<16x128xf32, #tpu.memory_space<vmem>>, vector<16x128xf32>
    %c0_1 = arith.constant 0 : index
    %c0_2 = arith.constant 0 : index
    %1 = vector.load %arg1[%c0_1, %c0_2] : memref<8x128xf32, #tpu.memory_space<vmem>>, vector<8x128xf32>
    %c0_3 = arith.constant 0 : index
    %c0_4 = arith.constant 0 : index
    %2 = vector.load %arg3[%c0_3, %c0_4] : memref<8x128xf32, #tpu.memory_space<vmem>>, vector<8x128xf32>
    %3 = vector.extract_strided_slice %2 {offsets = [0, 0], sizes = [1, 128], strides = [1, 1]} : vector<8x128xf32> to vector<1x128xf32>
    %4 = tpu.iota {dimensions = array<i32: 0>} : vector<16x128xi32>
    %c0_i32 = arith.constant 0 : i32
    %5 = vector.broadcast %c0_i32 : i32 to vector<16x128xi32>
    %6 = arith.cmpi eq, %4, %5 : vector<16x128xi32>
    %c1_i32 = arith.constant 1 : i32
    %7 = tpu.dynamic_rotate %0 by %c1_i32 dim 0 : vector<16x128xf32>, i32 -> vector<16x128xf32>
    %cst = arith.constant 0.000000e+00 : f32
    %8 = vector.broadcast %cst : f32 to vector<16x128xf32>
    %9 = arith.select %6, %8, %7 : vector<16x128xi1>, vector<16x128xf32>
    %c15_i32 = arith.constant 15 : i32
    %10 = vector.broadcast %c15_i32 : i32 to vector<16x128xi32>
    %11 = arith.cmpi eq, %4, %10 : vector<16x128xi32>
    %c15_i32_5 = arith.constant 15 : i32
    %12 = tpu.dynamic_rotate %0 by %c15_i32_5 dim 0 : vector<16x128xf32>, i32 -> vector<16x128xf32>
    %cst_6 = arith.constant 0.000000e+00 : f32
    %13 = vector.broadcast %cst_6 : f32 to vector<16x128xf32>
    %14 = arith.select %11, %13, %12 : vector<16x128xi1>, vector<16x128xf32>
    %c0_7 = arith.constant 0 : index
    %c0_8 = arith.constant 0 : index
    %c0_9 = arith.constant 0 : index
    %15 = vector.load %arg2[%c0_7, %c0_8, %c0_9] : memref<16x128x128xf32, #tpu.memory_space<vmem>>, vector<1x128x128xf32>
    %16 = vector.shape_cast %15 : vector<1x128x128xf32> to vector<128x128xf32>
    %cst_10 = arith.constant dense<0.000000e+00> : vector<16x128xf32>
    %17 = tpu.matmul %9, %16, %cst_10 {dimension_numbers = #tpu.dot_dimension_numbers<[1], [0], [0], [1], [0, 0, 1, 1], [], []>} : vector<16x128xf32>, vector<128x128xf32>, vector<16x128xf32> -> vector<16x128xf32>
    %c1 = arith.constant 1 : index
    %c0_11 = arith.constant 0 : index
    %c0_12 = arith.constant 0 : index
    %18 = vector.load %arg2[%c1, %c0_11, %c0_12] : memref<16x128x128xf32, #tpu.memory_space<vmem>>, vector<1x128x128xf32>
    %19 = vector.shape_cast %18 : vector<1x128x128xf32> to vector<128x128xf32>
    %cst_13 = arith.constant dense<0.000000e+00> : vector<16x128xf32>
    %20 = tpu.matmul %0, %19, %cst_13 {dimension_numbers = #tpu.dot_dimension_numbers<[1], [0], [0], [1], [0, 0, 1, 1], [], []>} : vector<16x128xf32>, vector<128x128xf32>, vector<16x128xf32> -> vector<16x128xf32>
    %21 = arith.addf %17, %20 : vector<16x128xf32>
    %c2 = arith.constant 2 : index
    %c0_14 = arith.constant 0 : index
    %c0_15 = arith.constant 0 : index
    %22 = vector.load %arg2[%c2, %c0_14, %c0_15] : memref<16x128x128xf32, #tpu.memory_space<vmem>>, vector<1x128x128xf32>
    %23 = vector.shape_cast %22 : vector<1x128x128xf32> to vector<128x128xf32>
    %cst_16 = arith.constant dense<0.000000e+00> : vector<16x128xf32>
    %24 = tpu.matmul %14, %23, %cst_16 {dimension_numbers = #tpu.dot_dimension_numbers<[1], [0], [0], [1], [0, 0, 1, 1], [], []>} : vector<16x128xf32>, vector<128x128xf32>, vector<16x128xf32> -> vector<16x128xf32>
    %25 = arith.addf %21, %24 : vector<16x128xf32>
    %26 = vector.broadcast %3 : vector<1x128xf32> to vector<16x128xf32>
    %27 = arith.addf %25, %26 : vector<16x128xf32>
    %cst_17 = arith.constant 0.000000e+00 : f32
    %28 = vector.broadcast %cst_17 : f32 to vector<16x128xf32>
    %29 = arith.maximumf %27, %28 : vector<16x128xf32>
    %30 = vector.extract_strided_slice %2 {offsets = [1, 0], sizes = [1, 128], strides = [1, 1]} : vector<8x128xf32> to vector<1x128xf32>
    %31 = tpu.iota {dimensions = array<i32: 0>} : vector<16x128xi32>
    %c0_i32_18 = arith.constant 0 : i32
    %32 = vector.broadcast %c0_i32_18 : i32 to vector<16x128xi32>
    %33 = arith.cmpi eq, %31, %32 : vector<16x128xi32>
    %c1_i32_19 = arith.constant 1 : i32
    %34 = tpu.dynamic_rotate %29 by %c1_i32_19 dim 0 : vector<16x128xf32>, i32 -> vector<16x128xf32>
    %cst_20 = arith.constant 0.000000e+00 : f32
    %35 = vector.broadcast %cst_20 : f32 to vector<16x128xf32>
    %36 = arith.select %33, %35, %34 : vector<16x128xi1>, vector<16x128xf32>
    %c15_i32_21 = arith.constant 15 : i32
    %37 = vector.broadcast %c15_i32_21 : i32 to vector<16x128xi32>
    %38 = arith.cmpi eq, %31, %37 : vector<16x128xi32>
    %c15_i32_22 = arith.constant 15 : i32
    %39 = tpu.dynamic_rotate %29 by %c15_i32_22 dim 0 : vector<16x128xf32>, i32 -> vector<16x128xf32>
    %cst_23 = arith.constant 0.000000e+00 : f32
    %40 = vector.broadcast %cst_23 : f32 to vector<16x128xf32>
    %41 = arith.select %38, %40, %39 : vector<16x128xi1>, vector<16x128xf32>
    %c3 = arith.constant 3 : index
    %c0_24 = arith.constant 0 : index
    %c0_25 = arith.constant 0 : index
    %42 = vector.load %arg2[%c3, %c0_24, %c0_25] : memref<16x128x128xf32, #tpu.memory_space<vmem>>, vector<1x128x128xf32>
    %43 = vector.shape_cast %42 : vector<1x128x128xf32> to vector<128x128xf32>
    %cst_26 = arith.constant dense<0.000000e+00> : vector<16x128xf32>
    %44 = tpu.matmul %36, %43, %cst_26 {dimension_numbers = #tpu.dot_dimension_numbers<[1], [0], [0], [1], [0, 0, 1, 1], [], []>} : vector<16x128xf32>, vector<128x128xf32>, vector<16x128xf32> -> vector<16x128xf32>
    %c4 = arith.constant 4 : index
    %c0_27 = arith.constant 0 : index
    %c0_28 = arith.constant 0 : index
    %45 = vector.load %arg2[%c4, %c0_27, %c0_28] : memref<16x128x128xf32, #tpu.memory_space<vmem>>, vector<1x128x128xf32>
    %46 = vector.shape_cast %45 : vector<1x128x128xf32> to vector<128x128xf32>
    %cst_29 = arith.constant dense<0.000000e+00> : vector<16x128xf32>
    %47 = tpu.matmul %29, %46, %cst_29 {dimension_numbers = #tpu.dot_dimension_numbers<[1], [0], [0], [1], [0, 0, 1, 1], [], []>} : vector<16x128xf32>, vector<128x128xf32>, vector<16x128xf32> -> vector<16x128xf32>
    %48 = arith.addf %44, %47 : vector<16x128xf32>
    %c5 = arith.constant 5 : index
    %c0_30 = arith.constant 0 : index
    %c0_31 = arith.constant 0 : index
    %49 = vector.load %arg2[%c5, %c0_30, %c0_31] : memref<16x128x128xf32, #tpu.memory_space<vmem>>, vector<1x128x128xf32>
    %50 = vector.shape_cast %49 : vector<1x128x128xf32> to vector<128x128xf32>
    %cst_32 = arith.constant dense<0.000000e+00> : vector<16x128xf32>
    %51 = tpu.matmul %41, %50, %cst_32 {dimension_numbers = #tpu.dot_dimension_numbers<[1], [0], [0], [1], [0, 0, 1, 1], [], []>} : vector<16x128xf32>, vector<128x128xf32>, vector<16x128xf32> -> vector<16x128xf32>
    %52 = arith.addf %48, %51 : vector<16x128xf32>
    %53 = vector.broadcast %30 : vector<1x128xf32> to vector<16x128xf32>
    %54 = arith.addf %52, %53 : vector<16x128xf32>
    %55 = arith.addf %54, %0 : vector<16x128xf32>
    %cst_33 = arith.constant 0.000000e+00 : f32
    %56 = vector.broadcast %cst_33 : f32 to vector<16x128xf32>
    %57 = arith.maximumf %55, %56 : vector<16x128xf32>
    %58 = vector.extract_strided_slice %2 {offsets = [2, 0], sizes = [1, 128], strides = [1, 1]} : vector<8x128xf32> to vector<1x128xf32>
    %59 = tpu.iota {dimensions = array<i32: 0>} : vector<8x128xi32>
    %c0_i32_34 = arith.constant 0 : i32
    %60 = vector.broadcast %c0_i32_34 : i32 to vector<8x128xi32>
    %61 = arith.cmpi eq, %59, %60 : vector<8x128xi32>
    %c1_i32_35 = arith.constant 1 : i32
    %62 = tpu.dynamic_rotate %1 by %c1_i32_35 dim 0 : vector<8x128xf32>, i32 -> vector<8x128xf32>
    %cst_36 = arith.constant 0.000000e+00 : f32
    %63 = vector.broadcast %cst_36 : f32 to vector<8x128xf32>
    %64 = arith.select %61, %63, %62 : vector<8x128xi1>, vector<8x128xf32>
    %c7_i32 = arith.constant 7 : i32
    %65 = vector.broadcast %c7_i32 : i32 to vector<8x128xi32>
    %66 = arith.cmpi eq, %59, %65 : vector<8x128xi32>
    %c7_i32_37 = arith.constant 7 : i32
    %67 = tpu.dynamic_rotate %1 by %c7_i32_37 dim 0 : vector<8x128xf32>, i32 -> vector<8x128xf32>
    %cst_38 = arith.constant 0.000000e+00 : f32
    %68 = vector.broadcast %cst_38 : f32 to vector<8x128xf32>
    %69 = arith.select %66, %68, %67 : vector<8x128xi1>, vector<8x128xf32>
    %c6 = arith.constant 6 : index
    %c0_39 = arith.constant 0 : index
    %c0_40 = arith.constant 0 : index
    %70 = vector.load %arg2[%c6, %c0_39, %c0_40] : memref<16x128x128xf32, #tpu.memory_space<vmem>>, vector<1x128x128xf32>
    %71 = vector.shape_cast %70 : vector<1x128x128xf32> to vector<128x128xf32>
    %cst_41 = arith.constant dense<0.000000e+00> : vector<8x128xf32>
    %72 = tpu.matmul %64, %71, %cst_41 {dimension_numbers = #tpu.dot_dimension_numbers<[1], [0], [0], [1], [0, 0, 1, 1], [], []>} : vector<8x128xf32>, vector<128x128xf32>, vector<8x128xf32> -> vector<8x128xf32>
    %c7 = arith.constant 7 : index
    %c0_42 = arith.constant 0 : index
    %c0_43 = arith.constant 0 : index
    %73 = vector.load %arg2[%c7, %c0_42, %c0_43] : memref<16x128x128xf32, #tpu.memory_space<vmem>>, vector<1x128x128xf32>
    %74 = vector.shape_cast %73 : vector<1x128x128xf32> to vector<128x128xf32>
    %cst_44 = arith.constant dense<0.000000e+00> : vector<8x128xf32>
    %75 = tpu.matmul %1, %74, %cst_44 {dimension_numbers = #tpu.dot_dimension_numbers<[1], [0], [0], [1], [0, 0, 1, 1], [], []>} : vector<8x128xf32>, vector<128x128xf32>, vector<8x128xf32> -> vector<8x128xf32>
    %76 = arith.addf %72, %75 : vector<8x128xf32>
    %c8 = arith.constant 8 : index
    %c0_45 = arith.constant 0 : index
    %c0_46 = arith.constant 0 : index
    %77 = vector.load %arg2[%c8, %c0_45, %c0_46] : memref<16x128x128xf32, #tpu.memory_space<vmem>>, vector<1x128x128xf32>
    %78 = vector.shape_cast %77 : vector<1x128x128xf32> to vector<128x128xf32>
    %cst_47 = arith.constant dense<0.000000e+00> : vector<8x128xf32>
    %79 = tpu.matmul %69, %78, %cst_47 {dimension_numbers = #tpu.dot_dimension_numbers<[1], [0], [0], [1], [0, 0, 1, 1], [], []>} : vector<8x128xf32>, vector<128x128xf32>, vector<8x128xf32> -> vector<8x128xf32>
    %80 = arith.addf %76, %79 : vector<8x128xf32>
    %81 = vector.broadcast %58 : vector<1x128xf32> to vector<8x128xf32>
    %82 = arith.addf %80, %81 : vector<8x128xf32>
    %cst_48 = arith.constant 0.000000e+00 : f32
    %83 = vector.broadcast %cst_48 : f32 to vector<8x128xf32>
    %84 = arith.maximumf %82, %83 : vector<8x128xf32>
    %85 = vector.extract_strided_slice %2 {offsets = [3, 0], sizes = [1, 128], strides = [1, 1]} : vector<8x128xf32> to vector<1x128xf32>
    %86 = tpu.iota {dimensions = array<i32: 0>} : vector<8x128xi32>
    %c0_i32_49 = arith.constant 0 : i32
    %87 = vector.broadcast %c0_i32_49 : i32 to vector<8x128xi32>
    %88 = arith.cmpi eq, %86, %87 : vector<8x128xi32>
    %c1_i32_50 = arith.constant 1 : i32
    %89 = tpu.dynamic_rotate %84 by %c1_i32_50 dim 0 : vector<8x128xf32>, i32 -> vector<8x128xf32>
    %cst_51 = arith.constant 0.000000e+00 : f32
    %90 = vector.broadcast %cst_51 : f32 to vector<8x128xf32>
    %91 = arith.select %88, %90, %89 : vector<8x128xi1>, vector<8x128xf32>
    %c7_i32_52 = arith.constant 7 : i32
    %92 = vector.broadcast %c7_i32_52 : i32 to vector<8x128xi32>
    %93 = arith.cmpi eq, %86, %92 : vector<8x128xi32>
    %c7_i32_53 = arith.constant 7 : i32
    %94 = tpu.dynamic_rotate %84 by %c7_i32_53 dim 0 : vector<8x128xf32>, i32 -> vector<8x128xf32>
    %cst_54 = arith.constant 0.000000e+00 : f32
    %95 = vector.broadcast %cst_54 : f32 to vector<8x128xf32>
    %96 = arith.select %93, %95, %94 : vector<8x128xi1>, vector<8x128xf32>
    %c9 = arith.constant 9 : index
    %c0_55 = arith.constant 0 : index
    %c0_56 = arith.constant 0 : index
    %97 = vector.load %arg2[%c9, %c0_55, %c0_56] : memref<16x128x128xf32, #tpu.memory_space<vmem>>, vector<1x128x128xf32>
    %98 = vector.shape_cast %97 : vector<1x128x128xf32> to vector<128x128xf32>
    %cst_57 = arith.constant dense<0.000000e+00> : vector<8x128xf32>
    %99 = tpu.matmul %91, %98, %cst_57 {dimension_numbers = #tpu.dot_dimension_numbers<[1], [0], [0], [1], [0, 0, 1, 1], [], []>} : vector<8x128xf32>, vector<128x128xf32>, vector<8x128xf32> -> vector<8x128xf32>
    %c10 = arith.constant 10 : index
    %c0_58 = arith.constant 0 : index
    %c0_59 = arith.constant 0 : index
    %100 = vector.load %arg2[%c10, %c0_58, %c0_59] : memref<16x128x128xf32, #tpu.memory_space<vmem>>, vector<1x128x128xf32>
    %101 = vector.shape_cast %100 : vector<1x128x128xf32> to vector<128x128xf32>
    %cst_60 = arith.constant dense<0.000000e+00> : vector<8x128xf32>
    %102 = tpu.matmul %84, %101, %cst_60 {dimension_numbers = #tpu.dot_dimension_numbers<[1], [0], [0], [1], [0, 0, 1, 1], [], []>} : vector<8x128xf32>, vector<128x128xf32>, vector<8x128xf32> -> vector<8x128xf32>
    %103 = arith.addf %99, %102 : vector<8x128xf32>
    %c11 = arith.constant 11 : index
    %c0_61 = arith.constant 0 : index
    %c0_62 = arith.constant 0 : index
    %104 = vector.load %arg2[%c11, %c0_61, %c0_62] : memref<16x128x128xf32, #tpu.memory_space<vmem>>, vector<1x128x128xf32>
    %105 = vector.shape_cast %104 : vector<1x128x128xf32> to vector<128x128xf32>
    %cst_63 = arith.constant dense<0.000000e+00> : vector<8x128xf32>
    %106 = tpu.matmul %96, %105, %cst_63 {dimension_numbers = #tpu.dot_dimension_numbers<[1], [0], [0], [1], [0, 0, 1, 1], [], []>} : vector<8x128xf32>, vector<128x128xf32>, vector<8x128xf32> -> vector<8x128xf32>
    %107 = arith.addf %103, %106 : vector<8x128xf32>
    %108 = vector.broadcast %85 : vector<1x128xf32> to vector<8x128xf32>
    %109 = arith.addf %107, %108 : vector<8x128xf32>
    %110 = arith.addf %109, %1 : vector<8x128xf32>
    %cst_64 = arith.constant 0.000000e+00 : f32
    %111 = vector.broadcast %cst_64 : f32 to vector<8x128xf32>
    %112 = arith.maximumf %110, %111 : vector<8x128xf32>
    %c12 = arith.constant 12 : index
    %c0_65 = arith.constant 0 : index
    %c0_66 = arith.constant 0 : index
    %113 = vector.load %arg2[%c12, %c0_65, %c0_66] : memref<16x128x128xf32, #tpu.memory_space<vmem>>, vector<1x128x128xf32>
    %114 = vector.shape_cast %113 : vector<1x128x128xf32> to vector<128x128xf32>
    %cst_67 = arith.constant dense<0.000000e+00> : vector<8x128xf32>
    %115 = tpu.matmul %112, %114, %cst_67 {dimension_numbers = #tpu.dot_dimension_numbers<[1], [0], [0], [1], [0, 0, 1, 1], [], []>} : vector<8x128xf32>, vector<128x128xf32>, vector<8x128xf32> -> vector<8x128xf32>
    %116 = vector.extract_strided_slice %2 {offsets = [4, 0], sizes = [1, 128], strides = [1, 1]} : vector<8x128xf32> to vector<1x128xf32>
    %117 = vector.broadcast %116 : vector<1x128xf32> to vector<8x128xf32>
    %118 = arith.addf %115, %117 : vector<8x128xf32>
    %119 = vector.shape_cast %118 : vector<8x128xf32> to vector<8x1x128xf32>
    %120 = vector.shape_cast %119 : vector<8x1x128xf32> to vector<8x1x128xf32>
    %121 = vector.broadcast %120 : vector<8x1x128xf32> to vector<8x2x128xf32>
    %122 = vector.shape_cast %121 : vector<8x2x128xf32> to vector<16x128xf32>
    %123 = arith.addf %57, %122 : vector<16x128xf32>
    %cst_68 = arith.constant 0.000000e+00 : f32
    %124 = vector.broadcast %cst_68 : f32 to vector<16x128xf32>
    %125 = arith.maximumf %123, %124 : vector<16x128xf32>
    %c0_69 = arith.constant 0 : index
    %c0_70 = arith.constant 0 : index
    %126 = vector.load %arg4[%c0_69, %c0_70] : memref<16x128xf32, #tpu.memory_space<vmem>>, vector<16x128xf32>
    tpu.vector_store %arg4[%c0_69, %c0_70], %125 {strides = array<i32>} : memref<16x128xf32, #tpu.memory_space<vmem>>, vector<16x128xf32>,
    %127 = vector.shape_cast %57 : vector<16x128xf32> to vector<8x2x128xf32>
    %128 = vector.extract_strided_slice %127 {offsets = [0, 0, 0], sizes = [8, 1, 128], strides = [1, 1, 1]} : vector<8x2x128xf32> to vector<8x1x128xf32>
    %129 = vector.shape_cast %128 : vector<8x1x128xf32> to vector<8x128xf32>
    %130 = vector.extract_strided_slice %127 {offsets = [0, 1, 0], sizes = [8, 1, 128], strides = [1, 1, 1]} : vector<8x2x128xf32> to vector<8x1x128xf32>
    %131 = vector.shape_cast %130 : vector<8x1x128xf32> to vector<8x128xf32>
    %132 = tpu.iota {dimensions = array<i32: 0>} : vector<8x128xi32>
    %c0_i32_71 = arith.constant 0 : i32
    %133 = vector.broadcast %c0_i32_71 : i32 to vector<8x128xi32>
    %134 = arith.cmpi eq, %132, %133 : vector<8x128xi32>
    %c1_i32_72 = arith.constant 1 : i32
    %135 = tpu.dynamic_rotate %131 by %c1_i32_72 dim 0 : vector<8x128xf32>, i32 -> vector<8x128xf32>
    %cst_73 = arith.constant 0.000000e+00 : f32
    %136 = vector.broadcast %cst_73 : f32 to vector<8x128xf32>
    %137 = arith.select %134, %136, %135 : vector<8x128xi1>, vector<8x128xf32>
    %c13 = arith.constant 13 : index
    %c0_74 = arith.constant 0 : index
    %c0_75 = arith.constant 0 : index
    %138 = vector.load %arg2[%c13, %c0_74, %c0_75] : memref<16x128x128xf32, #tpu.memory_space<vmem>>, vector<1x128x128xf32>
    %139 = vector.shape_cast %138 : vector<1x128x128xf32> to vector<128x128xf32>
    %cst_76 = arith.constant dense<0.000000e+00> : vector<8x128xf32>
    %140 = tpu.matmul %137, %139, %cst_76 {dimension_numbers = #tpu.dot_dimension_numbers<[1], [0], [0], [1], [0, 0, 1, 1], [], []>} : vector<8x128xf32>, vector<128x128xf32>, vector<8x128xf32> -> vector<8x128xf32>
    %c14 = arith.constant 14 : index
    %c0_77 = arith.constant 0 : index
    %c0_78 = arith.constant 0 : index
    %141 = vector.load %arg2[%c14, %c0_77, %c0_78] : memref<16x128x128xf32, #tpu.memory_space<vmem>>, vector<1x128x128xf32>
    %142 = vector.shape_cast %141 : vector<1x128x128xf32> to vector<128x128xf32>
    %cst_79 = arith.constant dense<0.000000e+00> : vector<8x128xf32>
    %143 = tpu.matmul %129, %142, %cst_79 {dimension_numbers = #tpu.dot_dimension_numbers<[1], [0], [0], [1], [0, 0, 1, 1], [], []>} : vector<8x128xf32>, vector<128x128xf32>, vector<8x128xf32> -> vector<8x128xf32>
    %144 = arith.addf %140, %143 : vector<8x128xf32>
    %c15 = arith.constant 15 : index
    %c0_80 = arith.constant 0 : index
    %c0_81 = arith.constant 0 : index
    %145 = vector.load %arg2[%c15, %c0_80, %c0_81] : memref<16x128x128xf32, #tpu.memory_space<vmem>>, vector<1x128x128xf32>
    %146 = vector.shape_cast %145 : vector<1x128x128xf32> to vector<128x128xf32>
    %cst_82 = arith.constant dense<0.000000e+00> : vector<8x128xf32>
    %147 = tpu.matmul %131, %146, %cst_82 {dimension_numbers = #tpu.dot_dimension_numbers<[1], [0], [0], [1], [0, 0, 1, 1], [], []>} : vector<8x128xf32>, vector<128x128xf32>, vector<8x128xf32> -> vector<8x128xf32>
    %148 = arith.addf %144, %147 : vector<8x128xf32>
    %149 = vector.extract_strided_slice %2 {offsets = [5, 0], sizes = [1, 128], strides = [1, 1]} : vector<8x128xf32> to vector<1x128xf32>
    %150 = vector.broadcast %149 : vector<1x128xf32> to vector<8x128xf32>
    %151 = arith.addf %148, %150 : vector<8x128xf32>
    %152 = arith.addf %151, %112 : vector<8x128xf32>
    %cst_83 = arith.constant 0.000000e+00 : f32
    %153 = vector.broadcast %cst_83 : f32 to vector<8x128xf32>
    %154 = arith.maximumf %152, %153 : vector<8x128xf32>
    %c0_84 = arith.constant 0 : index
    %c0_85 = arith.constant 0 : index
    %155 = vector.load %arg5[%c0_84, %c0_85] : memref<8x128xf32, #tpu.memory_space<vmem>>, vector<8x128xf32>
    tpu.vector_store %arg5[%c0_84, %c0_85], %154 {strides = array<i32>} : memref<8x128xf32, #tpu.memory_space<vmem>>, vector<8x128xf32>,
    return
  }
}

</mosaic_0001>

<llo_original>
// kernel: hr_module_forward_packed.1
$region0: #{hr_module_forward_packed.1}
  #allocation0 [shape = 'u32[]', space=smem, size = 0x4, offset = 0x4, fixed_abs, tag = 'smem constant byte address 0x4 - core index']
  #allocation1 [shape = 'u32[144,128]{1,0:T(1,128)}', space=vmem, size = 0x12000, scoped, tag = 'internal scratch']
  %s0 = inlined_call_operand.hbm [shape: f32[16,128], index: 0, kind: input, shape index: {}]
  %s1 = inlined_call_operand.hbm [shape: f32[8,128], index: 1, kind: input, shape index: {}]
  %s2 = inlined_call_operand.hbm [shape: f32[16,128,128], index: 2, kind: input, shape index: {}]
  %s3 = inlined_call_operand.hbm [shape: f32[8,128], index: 3, kind: input, shape index: {}]
  %s4 = inlined_call_operand.hbm [shape: f32[16,128], index: 4, kind: output, shape index: {0}]
  %s5 = inlined_call_operand.hbm [shape: f32[8,128], index: 5, kind: output, shape index: {1}]
  %6 = xla_tuple %s4, %s5
  %s7 = sld [smem:[#allocation0]]
  $region50: #{hr_module_forward_packed.1} parent=0
    _
  %s9 = ssub.s32 1, %s7
  %s10 = scalar_select 0, %s9, %s7
  $region1: #{hr_module_forward_packed.1} parent=0
    #allocation2 [shape = 'u8[8192]{0}', space=vmem, size = 0x2000, scoped, tag = 'input window, operand 0, single buffered']
    #allocation3 [shape = 's32[1]{0}', space=sflag, size = 0x4, scoped, tag = 'scoped memory for hr_module_forward_packed.1']
    #allocation4 [shape = 's32[1]{0}', space=sflag, size = 0x4, scoped, tag = 'scoped memory for hr_module_forward_packed.1']
    #allocation5 [shape = 'u8[4096]{0}', space=vmem, size = 0x1000, scoped, tag = 'input window, operand 1, single buffered']
    #allocation6 [shape = 's32[1]{0}', space=sflag, size = 0x4, scoped, tag = 'scoped memory for hr_module_forward_packed.1']
    #allocation7 [shape = 'u8[1048576]{0}', space=vmem, size = 0x100000, scoped, tag = 'input window, operand 2, single buffered']
    #allocation8 [shape = 'u8[4096]{0}', space=vmem, size = 0x1000, scoped, tag = 'input window, operand 3, single buffered']
    #allocation9 [shape = 's32[1]{0}', space=sflag, size = 0x4, scoped, tag = 'scoped memory for hr_module_forward_packed.1']
    #allocation10 [shape = 'u8[8192]{0}', space=vmem, size = 0x2000, scoped, tag = 'output window, operand 0, single buffered']
    #allocation11 [shape = 'u8[4096]{0}', space=vmem, size = 0x1000, scoped, tag = 'output window, operand 1, single buffered']
    #allocation12 [shape = 's32[1]{0}', space=sflag, size = 0x4, scoped, tag = 'scoped memory for hr_module_forward_packed.1']
    %11 = vsyncpa [#allocation3], 0
    %12 = vsyncpa [#allocation6], 0
    %13 = vsyncpa [#allocation9], 0
    %14 = vsyncpa [#allocation4], 0
    %15 = vsyncpa [#allocation12], 0
    // Predicated region
    $region2: #{hr_module_forward_packed.1} parent=1 // pred_check
      _
    $region3: #{hr_module_forward_packed.1} parent=1 // pred_check_branch
      %17 = sbr.rel (0) target = $region5
    $region4: #{hr_module_forward_packed.1} parent=1 // pred_region
      %s19 = ssub.s32 256, 256
      %20 = vsyncadd [#allocation3], %s19
      %s21 = sshll.u32 [#allocation2], 4
      %s22 = int_to_ptr.vmem [resolvable:$true] %s21
      %27 = dma.hbm_to_vmem [thread:$0]  %s0, 256, %s22, [#allocation3], 128, 128, 8
    $region5: #{hr_module_forward_packed.1} parent=1 // pred_fallthru
      _
    // Predicated region
    $region6: #{hr_module_forward_packed.1} parent=1 // pred_check
      _
    $region7: #{hr_module_forward_packed.1} parent=1 // pred_check_branch
      %29 = sbr.rel (0) target = $region9
    $region8: #{hr_module_forward_packed.1} parent=1 // pred_region
      %s31 = ssub.s32 128, 128
      %32 = vsyncadd [#allocation6], %s31
      %s34 = sshll.u32 [#allocation5], 4
      %s35 = int_to_ptr.vmem [resolvable:$true] %s34
      %37 = dma.hbm_to_vmem [thread:$0]  %s1, 128, %s35, [#allocation6]
    $region9: #{hr_module_forward_packed.1} parent=1 // pred_fallthru
      _
    // Predicated region
    $region10: #{hr_module_forward_packed.1} parent=1 // pred_check
      _
    $region11: #{hr_module_forward_packed.1} parent=1 // pred_check_branch
      %39 = sbr.rel (0) target = $region13
    $region12: #{hr_module_forward_packed.1} parent=1 // pred_region
      %s41 = ssub.s32 32768, 32768
      %42 = vsyncadd [#allocation6], %s41
      %s43 = sshll.u32 [#allocation7], 4
      %s44 = int_to_ptr.vmem [resolvable:$true] %s43
      %49 = dma.hbm_to_vmem [thread:$0]  %s2, 32768, %s44, [#allocation6], 128, 128, 8
    $region13: #{hr_module_forward_packed.1} parent=1 // pred_fallthru
      _
    // Predicated region
    $region14: #{hr_module_forward_packed.1} parent=1 // pred_check
      _
    $region15: #{hr_module_forward_packed.1} parent=1 // pred_check_branch
      %51 = sbr.rel (0) target = $region17
    $region16: #{hr_module_forward_packed.1} parent=1 // pred_region
      %s53 = ssub.s32 128, 128
      %54 = vsyncadd [#allocation9], %s53
      %s56 = sshll.u32 [#allocation8], 4
      %s57 = int_to_ptr.vmem [resolvable:$true] %s56
      %59 = dma.hbm_to_vmem [thread:$0]  %s3, 128, %s57, [#allocation9]
    $region17: #{hr_module_forward_packed.1} parent=1 // pred_fallthru
      _
    // Predicated region
    $region18: #{hr_module_forward_packed.1} parent=1 // pred_check
      _
    $region19: #{hr_module_forward_packed.1} parent=1 // pred_check_branch
      %61 = sbr.rel (0) target = $region21
    $region20: #{hr_module_forward_packed.1} parent=1 // pred_region
      %62 = dma.done [#allocation3], 256
    $region21: #{hr_module_forward_packed.1} parent=1 // pred_fallthru
      _
    // Predicated region
    $region22: #{hr_module_forward_packed.1} parent=1 // pred_check
      _
    $region23: #{hr_module_forward_packed.1} parent=1 // pred_check_branch
      %64 = sbr.rel (0) target = $region25
    $region24: #{hr_module_forward_packed.1} parent=1 // pred_region
      %65 = dma.done [#allocation6], 128
    $region25: #{hr_module_forward_packed.1} parent=1 // pred_fallthru
      _
    // Predicated region
    $region26: #{hr_module_forward_packed.1} parent=1 // pred_check
      _
    $region27: #{hr_module_forward_packed.1} parent=1 // pred_check_branch
      %67 = sbr.rel (0) target = $region29
    $region28: #{hr_module_forward_packed.1} parent=1 // pred_region
      %68 = dma.done [#allocation6], 32768
    $region29: #{hr_module_forward_packed.1} parent=1 // pred_fallthru
      _
    // Predicated region
    $region30: #{hr_module_forward_packed.1} parent=1 // pred_check
      _
    $region31: #{hr_module_forward_packed.1} parent=1 // pred_check_branch
      %70 = sbr.rel (0) target = $region33
    $region32: #{hr_module_forward_packed.1} parent=1 // pred_region
      %71 = dma.done [#allocation9], 128
    $region33: #{hr_module_forward_packed.1} parent=1 // pred_fallthru
      _
    %v72 = vld [vmem:[#allocation2] sm:$0xff]
    %v73 = vld [vmem:[#allocation2 + $0x8] sm:$0xff]
    %v74 = vld [vmem:[#allocation5] sm:$0xff]
    %v75 = vld [vmem:[#allocation8] sm:$0xff]
    %v76 = vlaneseq
    %v77 = vshrl.u32 %v76, 7
    %v78 = vadd.s32 %v77, 8
    %vm79 = vcmp.eq.s32.totalorder %v77, 0
    %vm80 = vcmp.eq.s32.totalorder %v78, 0
    %v81 = vrot.slane %v72, 7
    %v82 = vrot.slane %v73, 7
    %vm83 = vcmp.lt.s32.totalorder %v77, 1
    %v84 = vsel %vm83, %v81, %v82
    %v85 = vsel %vm83, %v82, %v81
    %v86 = vsel %vm79, 0.0, %v85
    %v87 = vsel %vm80, 0.0, %v84
    %vm88 = vcmp.eq.s32.totalorder %v77, 15
    %vm89 = vcmp.eq.s32.totalorder %v78, 15
    %v90 = vrot.slane %v72, 1
    %v91 = vrot.slane %v73, 1
    %vm92 = vcmp.lt.s32.totalorder %v77, 7
    %v93 = vsel %vm92, %v90, %v91
    %v94 = vsel %vm92, %v91, %v90
    %v95 = vsel %vm88, 0.0, %v93
    %v96 = vsel %vm89, 0.0, %v94
    %v97 = vld [vmem:[#allocation7] sm:$0xff]
    %v98 = vld [vmem:[#allocation7 + $0x8] sm:$0xff]
    %v99 = vld [vmem:[#allocation7 + $0x10] sm:$0xff]
    %v100 = vld [vmem:[#allocation7 + $0x18] sm:$0xff]
    %v101 = vld [vmem:[#allocation7 + $0x20] sm:$0xff]
    %v102 = vld [vmem:[#allocation7 + $0x28] sm:$0xff]
    %v103 = vld [vmem:[#allocation7 + $0x30] sm:$0xff]
    %v104 = vld [vmem:[#allocation7 + $0x38] sm:$0xff]
    %v105 = vld [vmem:[#allocation7 + $0x40] sm:$0xff]
    %v106 = vld [vmem:[#allocation7 + $0x48] sm:$0xff]
    %v107 = vld [vmem:[#allocation7 + $0x50] sm:$0xff]
    %v108 = vld [vmem:[#allocation7 + $0x58] sm:$0xff]
    %v109 = vld [vmem:[#allocation7 + $0x60] sm:$0xff]
    %v110 = vld [vmem:[#allocation7 + $0x68] sm:$0xff]
    %v111 = vld [vmem:[#allocation7 + $0x70] sm:$0xff]
    %v112 = vld [vmem:[#allocation7 + $0x78] sm:$0xff]
    %s113 = scalar_lea.vmem [#allocation7], 128
    %v114 = vld [vmem:[%s113] sm:$0xff]
    %v115 = vld [vmem:[%s113 + $0x8] sm:$0xff]
    %v116 = vld [vmem:[%s113 + $0x10] sm:$0xff]
    %v117 = vld [vmem:[%s113 + $0x18] sm:$0xff]
    %v118 = vld [vmem:[%s113 + $0x20] sm:$0xff]
    %v119 = vld [vmem:[%s113 + $0x28] sm:$0xff]
    %v120 = vld [vmem:[%s113 + $0x30] sm:$0xff]
    %v121 = vld [vmem:[%s113 + $0x38] sm:$0xff]
    %v122 = vld [vmem:[%s113 + $0x40] sm:$0xff]
    %v123 = vld [vmem:[%s113 + $0x48] sm:$0xff]
    %v124 = vld [vmem:[%s113 + $0x50] sm:$0xff]
    %v125 = vld [vmem:[%s113 + $0x58] sm:$0xff]
    %v126 = vld [vmem:[%s113 + $0x60] sm:$0xff]
    %v127 = vld [vmem:[%s113 + $0x68] sm:$0xff]
    %v128 = vld [vmem:[%s113 + $0x70] sm:$0xff]
    %v129 = vld [vmem:[%s113 + $0x78] sm:$0xff]
    %130 = vmatprep.subr.mxu0 0.0
    %131 = vmatpush1.msra.mxu0 %v114
    %132 = vmatprep.subr.mxu0 0.0
    %133 = vmatpush1.msra.mxu0 %v115
    %134 = vmatprep.subr.mxu0 0.0
    %135 = vmatpush1.msra.mxu0 %v116
    %136 = vmatprep.subr.mxu0 0.0
    %137 = vmatpush1.msra.mxu0 %v117
    %138 = vmatprep.subr.mxu0 0.0
    %139 = vmatpush1.msra.mxu0 %v118
    %140 = vmatprep.subr.mxu0 0.0
    %141 = vmatpush1.msra.mxu0 %v119
    %142 = vmatprep.subr.mxu0 0.0
    %143 = vmatpush1.msra.mxu0 %v120
    %144 = vmatprep.subr.mxu0 0.0
    %145 = vmatpush1.msra.mxu0 %v121
    %146 = vmatprep.subr.mxu0 0.0
    %147 = vmatpush1.msra.mxu0 %v122
    %148 = vmatprep.subr.mxu0 0.0
    %149 = vmatpush1.msra.mxu0 %v123
    %150 = vmatprep.subr.mxu0 0.0
    %151 = vmatpush1.msra.mxu0 %v124
    %152 = vmatprep.subr.mxu0 0.0
    %153 = vmatpush1.msra.mxu0 %v125
    %154 = vmatprep.subr.mxu0 0.0
    %155 = vmatpush1.msra.mxu0 %v126
    %156 = vmatprep.subr.mxu0 0.0
    %157 = vmatpush1.msra.mxu0 %v127
    %158 = vmatprep.subr.mxu0 0.0
    %159 = vmatpush1.msra.mxu0 %v128
    %160 = vmatprep.subr.mxu0 0.0
    %161 = vmatpush1.msra.mxu0 %v129
    %162 = vmatprep.subr.mxu0 0.0
    %163 = vmatpush1.msra.mxu0 0.0
    %164 = vmatprep.subr.mxu0 0.0
    %165 = vmatpush1.msra.mxu0 0.0
    %166 = vmatprep.subr.mxu0 0.0
    %167 = vmatpush1.msra.mxu0 0.0
    %168 = vmatprep.subr.mxu0 0.0
    %169 = vmatpush1.msra.mxu0 0.0
    %170 = vmatprep.subr.mxu0 0.0
    %171 = vmatpush1.msra.mxu0 0.0
    %172 = vmatprep.subr.mxu0 0.0
    %173 = vmatpush1.msra.mxu0 0.0
    %174 = vmatprep.subr.mxu0 0.0
    %175 = vmatpush1.msra.mxu0 0.0
    %176 = vmatprep.subr.mxu0 0.0
    %177 = vmatpush1.msra.mxu0 0.0
    %178 = vmatprep.subr.mxu0 0.0
    %179 = vmatpush1.msra.mxu0 0.0
    %180 = vmatprep.subr.mxu0 0.0
    %181 = vmatpush1.msra.mxu0 0.0
    %182 = vmatprep.subr.mxu0 0.0
    %183 = vmatpush1.msra.mxu0 0.0
    %184 = vmatprep.subr.mxu0 0.0
    %185 = vmatpush1.msra.mxu0 0.0
    %186 = vmatprep.subr.mxu0 0.0
    %187 = vmatpush1.msra.mxu0 0.0
    %188 = vmatprep.subr.mxu0 0.0
    %189 = vmatpush1.msra.mxu0 0.0
    %190 = vmatprep.subr.mxu0 0.0
    %191 = vmatpush1.msra.mxu0 0.0
    %192 = vmatprep.subr.mxu0 0.0
    %193 = vmatpush1.msra.mxu0 0.0
    %194 = vmatprep.mubr.f32.mxu0 0.0
    %195 = vmatmul.mubr.f32.gmra.mrb[0].mxu0 %v72
    %v196 = vpop.f32.mrb[0].mxu0
    %v197 = vadd.f32 0.0, %v196
    %v198 = vpop.f32.mrb[0].mxu0
    %199 = vmatprep.mubr.f32.mxu0 0.0
    %200 = vmatmul.mubr.f32.gmra.mrb[0].mxu0 %v73
    %v201 = vpop.f32.mrb[0].mxu0
    %v202 = vadd.f32 0.0, %v201
    %v203 = vpop.f32.mrb[0].mxu0
    %204 = vdwg.mxu0
    %205 = vmatprep.subr.mxu0 0.0
    %206 = vmatpush1.msra.mxu0 %v97
    %207 = vmatprep.subr.mxu0 0.0
    %208 = vmatpush1.msra.mxu0 %v98
    %209 = vmatprep.subr.mxu0 0.0
    %210 = vmatpush1.msra.mxu0 %v99
    %211 = vmatprep.subr.mxu0 0.0
    %212 = vmatpush1.msra.mxu0 %v100
    %213 = vmatprep.subr.mxu0 0.0
    %214 = vmatpush1.msra.mxu0 %v101
    %215 = vmatprep.subr.mxu0 0.0
    %216 = vmatpush1.msra.mxu0 %v102
    %217 = vmatprep.subr.mxu0 0.0
    %218 = vmatpush1.msra.mxu0 %v103
    %219 = vmatprep.subr.mxu0 0.0
    %220 = vmatpush1.msra.mxu0 %v104
    %221 = vmatprep.subr.mxu0 0.0
    %222 = vmatpush1.msra.mxu0 %v105
    %223 = vmatprep.subr.mxu0 0.0
    %224 = vmatpush1.msra.mxu0 %v106
    %225 = vmatprep.subr.mxu0 0.0
    %226 = vmatpush1.msra.mxu0 %v107
    %227 = vmatprep.subr.mxu0 0.0
    %228 = vmatpush1.msra.mxu0 %v108
    %229 = vmatprep.subr.mxu0 0.0
    %230 = vmatpush1.msra.mxu0 %v109
    %231 = vmatprep.subr.mxu0 0.0
    %232 = vmatpush1.msra.mxu0 %v110
    %233 = vmatprep.subr.mxu0 0.0
    %234 = vmatpush1.msra.mxu0 %v111
    %235 = vmatprep.subr.mxu0 0.0
    %236 = vmatpush1.msra.mxu0 %v112
    %237 = vmatprep.subr.mxu0 0.0
    %238 = vmatpush1.msra.mxu0 0.0
    %239 = vmatprep.subr.mxu0 0.0
    %240 = vmatpush1.msra.mxu0 0.0
    %241 = vmatprep.subr.mxu0 0.0
    %242 = vmatpush1.msra.mxu0 0.0
    %243 = vmatprep.subr.mxu0 0.0
    %244 = vmatpush1.msra.mxu0 0.0
    %245 = vmatprep.subr.mxu0 0.0
    %246 = vmatpush1.msra.mxu0 0.0
    %247 = vmatprep.subr.mxu0 0.0
    %248 = vmatpush1.msra.mxu0 0.0
    %249 = vmatprep.subr.mxu0 0.0
    %250 = vmatpush1.msra.mxu0 0.0
    %251 = vmatprep.subr.mxu0 0.0
    %252 = vmatpush1.msra.mxu0 0.0
    %253 = vmatprep.subr.mxu0 0.0
    %254 = vmatpush1.msra.mxu0 0.0
    %255 = vmatprep.subr.mxu0 0.0
    %256 = vmatpush1.msra.mxu0 0.0
    %257 = vmatprep.subr.mxu0 0.0
    %258 = vmatpush1.msra.mxu0 0.0
    %259 = vmatprep.subr.mxu0 0.0
    %260 = vmatpush1.msra.mxu0 0.0
    %261 = vmatprep.subr.mxu0 0.0
    %262 = vmatpush1.msra.mxu0 0.0
    %263 = vmatprep.subr.mxu0 0.0
    %264 = vmatpush1.msra.mxu0 0.0
    %265 = vmatprep.subr.mxu0 0.0
    %266 = vmatpush1.msra.mxu0 0.0
    %267 = vmatprep.subr.mxu0 0.0
    %268 = vmatpush1.msra.mxu0 0.0
    %269 = vmatprep.mubr.f32.mxu0 0.0
    %270 = vmatmul.mubr.f32.gmra.mrb[0].mxu0 %v86
    %v271 = vpop.f32.mrb[0].mxu0
    %v272 = vadd.f32 %v197, %v271
    %v273 = vpop.f32.mrb[0].mxu0
    %274 = vmatprep.mubr.f32.mxu0 0.0
    %275 = vmatmul.mubr.f32.gmra.mrb[0].mxu0 %v87
    %v276 = vpop.f32.mrb[0].mxu0
    %v277 = vadd.f32 %v202, %v276
    %v278 = vpop.f32.mrb[0].mxu0
    %279 = vdwg.mxu0
    %s280 = scalar_lea.vmem [#allocation7], 256
    %v281 = vld [vmem:[%s280] sm:$0xff]
    %v282 = vld [vmem:[%s280 + $0x8] sm:$0xff]
    %v283 = vld [vmem:[%s280 + $0x10] sm:$0xff]
    %v284 = vld [vmem:[%s280 + $0x18] sm:$0xff]
    %v285 = vld [vmem:[%s280 + $0x20] sm:$0xff]
    %v286 = vld [vmem:[%s280 + $0x28] sm:$0xff]
    %v287 = vld [vmem:[%s280 + $0x30] sm:$0xff]
    %v288 = vld [vmem:[%s280 + $0x38] sm:$0xff]
    %v289 = vld [vmem:[%s280 + $0x40] sm:$0xff]
    %v290 = vld [vmem:[%s280 + $0x48] sm:$0xff]
    %v291 = vld [vmem:[%s280 + $0x50] sm:$0xff]
    %v292 = vld [vmem:[%s280 + $0x58] sm:$0xff]
    %v293 = vld [vmem:[%s280 + $0x60] sm:$0xff]
    %v294 = vld [vmem:[%s280 + $0x68] sm:$0xff]
    %v295 = vld [vmem:[%s280 + $0x70] sm:$0xff]
    %v296 = vld [vmem:[%s280 + $0x78] sm:$0xff]
    %297 = vmatprep.subr.mxu0 0.0
    %298 = vmatpush1.msra.mxu0 %v281
    %299 = vmatprep.subr.mxu0 0.0
    %300 = vmatpush1.msra.mxu0 %v282
    %301 = vmatprep.subr.mxu0 0.0
    %302 = vmatpush1.msra.mxu0 %v283
    %303 = vmatprep.subr.mxu0 0.0
    %304 = vmatpush1.msra.mxu0 %v284
    %305 = vmatprep.subr.mxu0 0.0
    %306 = vmatpush1.msra.mxu0 %v285
    %307 = vmatprep.subr.mxu0 0.0
    %308 = vmatpush1.msra.mxu0 %v286
    %309 = vmatprep.subr.mxu0 0.0
    %310 = vmatpush1.msra.mxu0 %v287
    %311 = vmatprep.subr.mxu0 0.0
    %312 = vmatpush1.msra.mxu0 %v288
    %313 = vmatprep.subr.mxu0 0.0
    %314 = vmatpush1.msra.mxu0 %v289
    %315 = vmatprep.subr.mxu0 0.0
    %316 = vmatpush1.msra.mxu0 %v290
    %317 = vmatprep.subr.mxu0 0.0
    %318 = vmatpush1.msra.mxu0 %v291
    %319 = vmatprep.subr.mxu0 0.0
    %320 = vmatpush1.msra.mxu0 %v292
    %321 = vmatprep.subr.mxu0 0.0
    %322 = vmatpush1.msra.mxu0 %v293
    %323 = vmatprep.subr.mxu0 0.0
    %324 = vmatpush1.msra.mxu0 %v294
    %325 = vmatprep.subr.mxu0 0.0
    %326 = vmatpush1.msra.mxu0 %v295
    %327 = vmatprep.subr.mxu0 0.0
    %328 = vmatpush1.msra.mxu0 %v296
    %329 = vmatprep.subr.mxu0 0.0
    %330 = vmatpush1.msra.mxu0 0.0
    %331 = vmatprep.subr.mxu0 0.0
    %332 = vmatpush1.msra.mxu0 0.0
    %333 = vmatprep.subr.mxu0 0.0
    %334 = vmatpush1.msra.mxu0 0.0
    %335 = vmatprep.subr.mxu0 0.0
    %336 = vmatpush1.msra.mxu0 0.0
    %337 = vmatprep.subr.mxu0 0.0
    %338 = vmatpush1.msra.mxu0 0.0
    %339 = vmatprep.subr.mxu0 0.0
    %340 = vmatpush1.msra.mxu0 0.0
    %341 = vmatprep.subr.mxu0 0.0
    %342 = vmatpush1.msra.mxu0 0.0
    %343 = vmatprep.subr.mxu0 0.0
    %344 = vmatpush1.msra.mxu0 0.0
    %345 = vmatprep.subr.mxu0 0.0
    %346 = vmatpush1.msra.mxu0 0.0
    %347 = vmatprep.subr.mxu0 0.0
    %348 = vmatpush1.msra.mxu0 0.0
    %349 = vmatprep.subr.mxu0 0.0
    %350 = vmatpush1.msra.mxu0 0.0
    %351 = vmatprep.subr.mxu0 0.0
    %352 = vmatpush1.msra.mxu0 0.0
    %353 = vmatprep.subr.mxu0 0.0
    %354 = vmatpush1.msra.mxu0 0.0
    %355 = vmatprep.subr.mxu0 0.0
    %356 = vmatpush1.msra.mxu0 0.0
    %357 = vmatprep.subr.mxu0 0.0
    %358 = vmatpush1.msra.mxu0 0.0
    %359 = vmatprep.subr.mxu0 0.0
    %360 = vmatpush1.msra.mxu0 0.0
    %361 = vmatprep.mubr.f32.mxu0 0.0
    %362 = vmatmul.mubr.f32.gmra.mrb[0].mxu0 %v95
    %v363 = vpop.f32.mrb[0].mxu0
    %v364 = vadd.f32 0.0, %v363
    %v365 = vpop.f32.mrb[0].mxu0
    %366 = vmatprep.mubr.f32.mxu0 0.0
    %367 = vmatmul.mubr.f32.gmra.mrb[0].mxu0 %v96
    %v368 = vpop.f32.mrb[0].mxu0
    %v369 = vadd.f32 0.0, %v368
    %v370 = vpop.f32.mrb[0].mxu0
    %371 = vdwg.mxu0
    %v372 = vadd.f32 %v272, %v364
    %v373 = vadd.f32 %v277, %v369
    %v374 = vlaneseq
    %v375 = vshrl.u32 %v374, 7
    %v376 = vsub.s32 0, %v375
    %v377 = vrot.slane %v75, %v376
    %v378 = vadd.f32 %v372, %v377
    %v379 = vadd.f32 %v373, %v377
    %v380 = vmax.f32 %v378, 0.0
    %v381 = vmax.f32 %v379, 0.0
    %v382 = vrot.slane %v380, 7
    %v383 = vrot.slane %v381, 7
    %v384 = vsel %vm83, %v382, %v383
    %v385 = vsel %vm83, %v383, %v382
    %v386 = vsel %vm79, 0.0, %v385
    %v387 = vsel %vm80, 0.0, %v384
    %v388 = vrot.slane %v380, 1
    %v389 = vrot.slane %v381, 1
    %v390 = vsel %vm92, %v388, %v389
    %v391 = vsel %vm92, %v389, %v388
    %v392 = vsel %vm88, 0.0, %v390
    %v393 = vsel %vm89, 0.0, %v391
    %s394 = scalar_lea.vmem [#allocation7], 384
    %v395 = vld [vmem:[%s394] sm:$0xff]
    %v396 = vld [vmem:[%s394 + $0x8] sm:$0xff]
    %v397 = vld [vmem:[%s394 + $0x10] sm:$0xff]
    %v398 = vld [vmem:[%s394 + $0x18] sm:$0xff]
    %v399 = vld [vmem:[%s394 + $0x20] sm:$0xff]
    %v400 = vld [vmem:[%s394 + $0x28] sm:$0xff]
    %v401 = vld [vmem:[%s394 + $0x30] sm:$0xff]
    %v402 = vld [vmem:[%s394 + $0x38] sm:$0xff]
    %v403 = vld [vmem:[%s394 + $0x40] sm:$0xff]
    %v404 = vld [vmem:[%s394 + $0x48] sm:$0xff]
    %v405 = vld [vmem:[%s394 + $0x50] sm:$0xff]
    %v406 = vld [vmem:[%s394 + $0x58] sm:$0xff]
    %v407 = vld [vmem:[%s394 + $0x60] sm:$0xff]
    %v408 = vld [vmem:[%s394 + $0x68] sm:$0xff]
    %v409 = vld [vmem:[%s394 + $0x70] sm:$0xff]
    %v410 = vld [vmem:[%s394 + $0x78] sm:$0xff]
    %s411 = scalar_lea.vmem [#allocation7], 512
    %v412 = vld [vmem:[%s411] sm:$0xff]
    %v413 = vld [vmem:[%s411 + $0x8] sm:$0xff]
    %v414 = vld [vmem:[%s411 + $0x10] sm:$0xff]
    %v415 = vld [vmem:[%s411 + $0x18] sm:$0xff]
    %v416 = vld [vmem:[%s411 + $0x20] sm:$0xff]
    %v417 = vld [vmem:[%s411 + $0x28] sm:$0xff]
    %v418 = vld [vmem:[%s411 + $0x30] sm:$0xff]
    %v419 = vld [vmem:[%s411 + $0x38] sm:$0xff]
    %v420 = vld [vmem:[%s411 + $0x40] sm:$0xff]
    %v421 = vld [vmem:[%s411 + $0x48] sm:$0xff]
    %v422 = vld [vmem:[%s411 + $0x50] sm:$0xff]
    %v423 = vld [vmem:[%s411 + $0x58] sm:$0xff]
    %v424 = vld [vmem:[%s411 + $0x60] sm:$0xff]
    %v425 = vld [vmem:[%s411 + $0x68] sm:$0xff]
    %v426 = vld [vmem:[%s411 + $0x70] sm:$0xff]
    %v427 = vld [vmem:[%s411 + $0x78] sm:$0xff]
    %428 = vmatprep.subr.mxu0 0.0
    %429 = vmatpush1.msra.mxu0 %v412
    %430 = vmatprep.subr.mxu0 0.0
    %431 = vmatpush1.msra.mxu0 %v413
    %432 = vmatprep.subr.mxu0 0.0
    %433 = vmatpush1.msra.mxu0 %v414
    %434 = vmatprep.subr.mxu0 0.0
    %435 = vmatpush1.msra.mxu0 %v415
    %436 = vmatprep.subr.mxu0 0.0
    %437 = vmatpush1.msra.mxu0 %v416
    %438 = vmatprep.subr.mxu0 0.0
    %439 = vmatpush1.msra.mxu0 %v417
    %440 = vmatprep.subr.mxu0 0.0
    %441 = vmatpush1.msra.mxu0 %v418
    %442 = vmatprep.subr.mxu0 0.0
    %443 = vmatpush1.msra.mxu0 %v419
    %444 = vmatprep.subr.mxu0 0.0
    %445 = vmatpush1.msra.mxu0 %v420
    %446 = vmatprep.subr.mxu0 0.0
    %447 = vmatpush1.msra.mxu0 %v421
    %448 = vmatprep.subr.mxu0 0.0
    %449 = vmatpush1.msra.mxu0 %v422
    %450 = vmatprep.subr.mxu0 0.0
    %451 = vmatpush1.msra.mxu0 %v423
    %452 = vmatprep.subr.mxu0 0.0
    %453 = vmatpush1.msra.mxu0 %v424
    %454 = vmatprep.subr.mxu0 0.0
    %455 = vmatpush1.msra.mxu0 %v425
    %456 = vmatprep.subr.mxu0 0.0
    %457 = vmatpush1.msra.mxu0 %v426
    %458 = vmatprep.subr.mxu0 0.0
    %459 = vmatpush1.msra.mxu0 %v427
    %460 = vmatprep.subr.mxu0 0.0
    %461 = vmatpush1.msra.mxu0 0.0
    %462 = vmatprep.subr.mxu0 0.0
    %463 = vmatpush1.msra.mxu0 0.0
    %464 = vmatprep.subr.mxu0 0.0
    %465 = vmatpush1.msra.mxu0 0.0
    %466 = vmatprep.subr.mxu0 0.0
    %467 = vmatpush1.msra.mxu0 0.0
    %468 = vmatprep.subr.mxu0 0.0
    %469 = vmatpush1.msra.mxu0 0.0
    %470 = vmatprep.subr.mxu0 0.0
    %471 = vmatpush1.msra.mxu0 0.0
    %472 = vmatprep.subr.mxu0 0.0
    %473 = vmatpush1.msra.mxu0 0.0
    %474 = vmatprep.subr.mxu0 0.0
    %475 = vmatpush1.msra.mxu0 0.0
    %476 = vmatprep.subr.mxu0 0.0
    %477 = vmatpush1.msra.mxu0 0.0
    %478 = vmatprep.subr.mxu0 0.0
    %479 = vmatpush1.msra.mxu0 0.0
    %480 = vmatprep.subr.mxu0 0.0
    %481 = vmatpush1.msra.mxu0 0.0
    %482 = vmatprep.subr.mxu0 0.0
    %483 = vmatpush1.msra.mxu0 0.0
    %484 = vmatprep.subr.mxu0 0.0
    %485 = vmatpush1.msra.mxu0 0.0
    %486 = vmatprep.subr.mxu0 0.0
    %487 = vmatpush1.msra.mxu0 0.0
    %488 = vmatprep.subr.mxu0 0.0
    %489 = vmatpush1.msra.mxu0 0.0
    %490 = vmatprep.subr.mxu0 0.0
    %491 = vmatpush1.msra.mxu0 0.0
    %492 = vmatprep.mubr.f32.mxu0 0.0
    %493 = vmatmul.mubr.f32.gmra.mrb[0].mxu0 %v380
    %v494 = vpop.f32.mrb[0].mxu0
    %v495 = vadd.f32 0.0, %v494
    %v496 = vpop.f32.mrb[0].mxu0
    %497 = vmatprep.mubr.f32.mxu0 0.0
    %498 = vmatmul.mubr.f32.gmra.mrb[0].mxu0 %v381
    %v499 = vpop.f32.mrb[0].mxu0
    %v500 = vadd.f32 0.0, %v499
    %v501 = vpop.f32.mrb[0].mxu0
    %502 = vdwg.mxu0
    %503 = vmatprep.subr.mxu0 0.0
    %504 = vmatpush1.msra.mxu0 %v395
    %505 = vmatprep.subr.mxu0 0.0
    %506 = vmatpush1.msra.mxu0 %v396
    %507 = vmatprep.subr.mxu0 0.0
    %508 = vmatpush1.msra.mxu0 %v397
    %509 = vmatprep.subr.mxu0 0.0
    %510 = vmatpush1.msra.mxu0 %v398
    %511 = vmatprep.subr.mxu0 0.0
    %512 = vmatpush1.msra.mxu0 %v399
    %513 = vmatprep.subr.mxu0 0.0
    %514 = vmatpush1.msra.mxu0 %v400
    %515 = vmatprep.subr.mxu0 0.0
    %516 = vmatpush1.msra.mxu0 %v401
    %517 = vmatprep.subr.mxu0 0.0
    %518 = vmatpush1.msra.mxu0 %v402
    %519 = vmatprep.subr.mxu0 0.0
    %520 = vmatpush1.msra.mxu0 %v403
    %521 = vmatprep.subr.mxu0 0.0
    %522 = vmatpush1.msra.mxu0 %v404
    %523 = vmatprep.subr.mxu0 0.0
    %524 = vmatpush1.msra.mxu0 %v405
    %525 = vmatprep.subr.mxu0 0.0
    %526 = vmatpush1.msra.mxu0 %v406
    %527 = vmatprep.subr.mxu0 0.0
    %528 = vmatpush1.msra.mxu0 %v407
    %529 = vmatprep.subr.mxu0 0.0
    %530 = vmatpush1.msra.mxu0 %v408
    %531 = vmatprep.subr.mxu0 0.0
    %532 = vmatpush1.msra.mxu0 %v409
    %533 = vmatprep.subr.mxu0 0.0
    %534 = vmatpush1.msra.mxu0 %v410
    %535 = vmatprep.subr.mxu0 0.0
    %536 = vmatpush1.msra.mxu0 0.0
    %537 = vmatprep.subr.mxu0 0.0
    %538 = vmatpush1.msra.mxu0 0.0
    %539 = vmatprep.subr.mxu0 0.0
    %540 = vmatpush1.msra.mxu0 0.0
    %541 = vmatprep.subr.mxu0 0.0
    %542 = vmatpush1.msra.mxu0 0.0
    %543 = vmatprep.subr.mxu0 0.0
    %544 = vmatpush1.msra.mxu0 0.0
    %545 = vmatprep.subr.mxu0 0.0
    %546 = vmatpush1.msra.mxu0 0.0
    %547 = vmatprep.subr.mxu0 0.0
    %548 = vmatpush1.msra.mxu0 0.0
    %549 = vmatprep.subr.mxu0 0.0
    %550 = vmatpush1.msra.mxu0 0.0
    %551 = vmatprep.subr.mxu0 0.0
    %552 = vmatpush1.msra.mxu0 0.0
    %553 = vmatprep.subr.mxu0 0.0
    %554 = vmatpush1.msra.mxu0 0.0
    %555 = vmatprep.subr.mxu0 0.0
    %556 = vmatpush1.msra.mxu0 0.0
    %557 = vmatprep.subr.mxu0 0.0
    %558 = vmatpush1.msra.mxu0 0.0
    %559 = vmatprep.subr.mxu0 0.0
    %560 = vmatpush1.msra.mxu0 0.0
    %561 = vmatprep.subr.mxu0 0.0
    %562 = vmatpush1.msra.mxu0 0.0
    %563 = vmatprep.subr.mxu0 0.0
    %564 = vmatpush1.msra.mxu0 0.0
    %565 = vmatprep.subr.mxu0 0.0
    %566 = vmatpush1.msra.mxu0 0.0
    %567 = vmatprep.mubr.f32.mxu0 0.0
    %568 = vmatmul.mubr.f32.gmra.mrb[0].mxu0 %v386
    %v569 = vpop.f32.mrb[0].mxu0
    %v570 = vadd.f32 %v495, %v569
    %v571 = vpop.f32.mrb[0].mxu0
    %572 = vmatprep.mubr.f32.mxu0 0.0
    %573 = vmatmul.mubr.f32.gmra.mrb[0].mxu0 %v387
    %v574 = vpop.f32.mrb[0].mxu0
    %v575 = vadd.f32 %v500, %v574
    %v576 = vpop.f32.mrb[0].mxu0
    %577 = vdwg.mxu0
    %s578 = scalar_lea.vmem [#allocation7], 640
    %v579 = vld [vmem:[%s578] sm:$0xff]
    %v580 = vld [vmem:[%s578 + $0x8] sm:$0xff]
    %v581 = vld [vmem:[%s578 + $0x10] sm:$0xff]
    %v582 = vld [vmem:[%s578 + $0x18] sm:$0xff]
    %v583 = vld [vmem:[%s578 + $0x20] sm:$0xff]
    %v584 = vld [vmem:[%s578 + $0x28] sm:$0xff]
    %v585 = vld [vmem:[%s578 + $0x30] sm:$0xff]
    %v586 = vld [vmem:[%s578 + $0x38] sm:$0xff]
    %v587 = vld [vmem:[%s578 + $0x40] sm:$0xff]
    %v588 = vld [vmem:[%s578 + $0x48] sm:$0xff]
    %v589 = vld [vmem:[%s578 + $0x50] sm:$0xff]
    %v590 = vld [vmem:[%s578 + $0x58] sm:$0xff]
    %v591 = vld [vmem:[%s578 + $0x60] sm:$0xff]
    %v592 = vld [vmem:[%s578 + $0x68] sm:$0xff]
    %v593 = vld [vmem:[%s578 + $0x70] sm:$0xff]
    %v594 = vld [vmem:[%s578 + $0x78] sm:$0xff]
    %595 = vmatprep.subr.mxu0 0.0
    %596 = vmatpush1.msra.mxu0 %v579
    %597 = vmatprep.subr.mxu0 0.0
    %598 = vmatpush1.msra.mxu0 %v580
    %599 = vmatprep.subr.mxu0 0.0
    %600 = vmatpush1.msra.mxu0 %v581
    %601 = vmatprep.subr.mxu0 0.0
    %602 = vmatpush1.msra.mxu0 %v582
    %603 = vmatprep.subr.mxu0 0.0
    %604 = vmatpush1.msra.mxu0 %v583
    %605 = vmatprep.subr.mxu0 0.0
    %606 = vmatpush1.msra.mxu0 %v584
    %607 = vmatprep.subr.mxu0 0.0
    %608 = vmatpush1.msra.mxu0 %v585
    %609 = vmatprep.subr.mxu0 0.0
    %610 = vmatpush1.msra.mxu0 %v586
    %611 = vmatprep.subr.mxu0 0.0
    %612 = vmatpush1.msra.mxu0 %v587
    %613 = vmatprep.subr.mxu0 0.0
    %614 = vmatpush1.msra.mxu0 %v588
    %615 = vmatprep.subr.mxu0 0.0
    %616 = vmatpush1.msra.mxu0 %v589
    %617 = vmatprep.subr.mxu0 0.0
    %618 = vmatpush1.msra.mxu0 %v590
    %619 = vmatprep.subr.mxu0 0.0
    %620 = vmatpush1.msra.mxu0 %v591
    %621 = vmatprep.subr.mxu0 0.0
    %622 = vmatpush1.msra.mxu0 %v592
    %623 = vmatprep.subr.mxu0 0.0
    %624 = vmatpush1.msra.mxu0 %v593
    %625 = vmatprep.subr.mxu0 0.0
    %626 = vmatpush1.msra.mxu0 %v594
    %627 = vmatprep.subr.mxu0 0.0
    %628 = vmatpush1.msra.mxu0 0.0
    %629 = vmatprep.subr.mxu0 0.0
    %630 = vmatpush1.msra.mxu0 0.0
    %631 = vmatprep.subr.mxu0 0.0
    %632 = vmatpush1.msra.mxu0 0.0
    %633 = vmatprep.subr.mxu0 0.0
    %634 = vmatpush1.msra.mxu0 0.0
    %635 = vmatprep.subr.mxu0 0.0
    %636 = vmatpush1.msra.mxu0 0.0
    %637 = vmatprep.subr.mxu0 0.0
    %638 = vmatpush1.msra.mxu0 0.0
    %639 = vmatprep.subr.mxu0 0.0
    %640 = vmatpush1.msra.mxu0 0.0
    %641 = vmatprep.subr.mxu0 0.0
    %642 = vmatpush1.msra.mxu0 0.0
    %643 = vmatprep.subr.mxu0 0.0
    %644 = vmatpush1.msra.mxu0 0.0
    %645 = vmatprep.subr.mxu0 0.0
    %646 = vmatpush1.msra.mxu0 0.0
    %647 = vmatprep.subr.mxu0 0.0
    %648 = vmatpush1.msra.mxu0 0.0
    %649 = vmatprep.subr.mxu0 0.0
    %650 = vmatpush1.msra.mxu0 0.0
    %651 = vmatprep.subr.mxu0 0.0
    %652 = vmatpush1.msra.mxu0 0.0
    %653 = vmatprep.subr.mxu0 0.0
    %654 = vmatpush1.msra.mxu0 0.0
    %655 = vmatprep.subr.mxu0 0.0
    %656 = vmatpush1.msra.mxu0 0.0
    %657 = vmatprep.subr.mxu0 0.0
    %658 = vmatpush1.msra.mxu0 0.0
    %659 = vmatprep.mubr.f32.mxu0 0.0
    %660 = vmatmul.mubr.f32.gmra.mrb[0].mxu0 %v392
    %v661 = vpop.f32.mrb[0].mxu0
    %v662 = vadd.f32 0.0, %v661
    %v663 = vpop.f32.mrb[0].mxu0
    %664 = vmatprep.mubr.f32.mxu0 0.0
    %665 = vmatmul.mubr.f32.gmra.mrb[0].mxu0 %v393
    %v666 = vpop.f32.mrb[0].mxu0
    %v667 = vadd.f32 0.0, %v666
    %v668 = vpop.f32.mrb[0].mxu0
    %669 = vdwg.mxu0
    %v670 = vadd.f32 %v570, %v662
    %v671 = vadd.f32 %v575, %v667
    %v672 = vlaneseq
    %v673 = vshrl.u32 %v672, 7
    %v674 = vsub.s32 1, %v673
    %v675 = vrot.slane %v75, %v674
    %v676 = vadd.f32 %v670, %v675
    %v677 = vadd.f32 %v671, %v675
    %v678 = vadd.f32 %v676, %v72
    %v679 = vadd.f32 %v677, %v73
    %v680 = vmax.f32 %v678, 0.0
    %v681 = vmax.f32 %v679, 0.0
    %v682 = vrot.slane %v74, 7
    %v683 = vsel %vm79, 0.0, %v682
    %vm684 = vcmp.eq.s32.totalorder %v77, 7
    %v685 = vrot.slane %v74, 1
    %v686 = vsel %vm684, 0.0, %v685
    %s687 = scalar_lea.vmem [#allocation7], 768
    %v688 = vld [vmem:[%s687] sm:$0xff]
    %v689 = vld [vmem:[%s687 + $0x8] sm:$0xff]
    %v690 = vld [vmem:[%s687 + $0x10] sm:$0xff]
    %v691 = vld [vmem:[%s687 + $0x18] sm:$0xff]
    %v692 = vld [vmem:[%s687 + $0x20] sm:$0xff]
    %v693 = vld [vmem:[%s687 + $0x28] sm:$0xff]
    %v694 = vld [vmem:[%s687 + $0x30] sm:$0xff]
    %v695 = vld [vmem:[%s687 + $0x38] sm:$0xff]
    %v696 = vld [vmem:[%s687 + $0x40] sm:$0xff]
    %v697 = vld [vmem:[%s687 + $0x48] sm:$0xff]
    %v698 = vld [vmem:[%s687 + $0x50] sm:$0xff]
    %v699 = vld [vmem:[%s687 + $0x58] sm:$0xff]
    %v700 = vld [vmem:[%s687 + $0x60] sm:$0xff]
    %v701 = vld [vmem:[%s687 + $0x68] sm:$0xff]
    %v702 = vld [vmem:[%s687 + $0x70] sm:$0xff]
    %v703 = vld [vmem:[%s687 + $0x78] sm:$0xff]
    %s704 = scalar_lea.vmem [#allocation7], 896
    %v705 = vld [vmem:[%s704] sm:$0xff]
    %v706 = vld [vmem:[%s704 + $0x8] sm:$0xff]
    %v707 = vld [vmem:[%s704 + $0x10] sm:$0xff]
    %v708 = vld [vmem:[%s704 + $0x18] sm:$0xff]
    %v709 = vld [vmem:[%s704 + $0x20] sm:$0xff]
    %v710 = vld [vmem:[%s704 + $0x28] sm:$0xff]
    %v711 = vld [vmem:[%s704 + $0x30] sm:$0xff]
    %v712 = vld [vmem:[%s704 + $0x38] sm:$0xff]
    %v713 = vld [vmem:[%s704 + $0x40] sm:$0xff]
    %v714 = vld [vmem:[%s704 + $0x48] sm:$0xff]
    %v715 = vld [vmem:[%s704 + $0x50] sm:$0xff]
    %v716 = vld [vmem:[%s704 + $0x58] sm:$0xff]
    %v717 = vld [vmem:[%s704 + $0x60] sm:$0xff]
    %v718 = vld [vmem:[%s704 + $0x68] sm:$0xff]
    %v719 = vld [vmem:[%s704 + $0x70] sm:$0xff]
    %v720 = vld [vmem:[%s704 + $0x78] sm:$0xff]
    %721 = vmatprep.subr.mxu0 0.0
    %722 = vmatpush1.msra.mxu0 %v705
    %723 = vmatprep.subr.mxu0 0.0
    %724 = vmatpush1.msra.mxu0 %v706
    %725 = vmatprep.subr.mxu0 0.0
    %726 = vmatpush1.msra.mxu0 %v707
    %727 = vmatprep.subr.mxu0 0.0
    %728 = vmatpush1.msra.mxu0 %v708
    %729 = vmatprep.subr.mxu0 0.0
    %730 = vmatpush1.msra.mxu0 %v709
    %731 = vmatprep.subr.mxu0 0.0
    %732 = vmatpush1.msra.mxu0 %v710
    %733 = vmatprep.subr.mxu0 0.0
    %734 = vmatpush1.msra.mxu0 %v711
    %735 = vmatprep.subr.mxu0 0.0
    %736 = vmatpush1.msra.mxu0 %v712
    %737 = vmatprep.subr.mxu0 0.0
    %738 = vmatpush1.msra.mxu0 %v713
    %739 = vmatprep.subr.mxu0 0.0
    %740 = vmatpush1.msra.mxu0 %v714
    %741 = vmatprep.subr.mxu0 0.0
    %742 = vmatpush1.msra.mxu0 %v715
    %743 = vmatprep.subr.mxu0 0.0
    %744 = vmatpush1.msra.mxu0 %v716
    %745 = vmatprep.subr.mxu0 0.0
    %746 = vmatpush1.msra.mxu0 %v717
    %747 = vmatprep.subr.mxu0 0.0
    %748 = vmatpush1.msra.mxu0 %v718
    %749 = vmatprep.subr.mxu0 0.0
    %750 = vmatpush1.msra.mxu0 %v719
    %751 = vmatprep.subr.mxu0 0.0
    %752 = vmatpush1.msra.mxu0 %v720
    %753 = vmatprep.subr.mxu0 0.0
    %754 = vmatpush1.msra.mxu0 0.0
    %755 = vmatprep.subr.mxu0 0.0
    %756 = vmatpush1.msra.mxu0 0.0
    %757 = vmatprep.subr.mxu0 0.0
    %758 = vmatpush1.msra.mxu0 0.0
    %759 = vmatprep.subr.mxu0 0.0
    %760 = vmatpush1.msra.mxu0 0.0
    %761 = vmatprep.subr.mxu0 0.0
    %762 = vmatpush1.msra.mxu0 0.0
    %763 = vmatprep.subr.mxu0 0.0
    %764 = vmatpush1.msra.mxu0 0.0
    %765 = vmatprep.subr.mxu0 0.0
    %766 = vmatpush1.msra.mxu0 0.0
    %767 = vmatprep.subr.mxu0 0.0
    %768 = vmatpush1.msra.mxu0 0.0
    %769 = vmatprep.subr.mxu0 0.0
    %770 = vmatpush1.msra.mxu0 0.0
    %771 = vmatprep.subr.mxu0 0.0
    %772 = vmatpush1.msra.mxu0 0.0
    %773 = vmatprep.subr.mxu0 0.0
    %774 = vmatpush1.msra.mxu0 0.0
    %775 = vmatprep.subr.mxu0 0.0
    %776 = vmatpush1.msra.mxu0 0.0
    %777 = vmatprep.subr.mxu0 0.0
    %778 = vmatpush1.msra.mxu0 0.0
    %779 = vmatprep.subr.mxu0 0.0
    %780 = vmatpush1.msra.mxu0 0.0
    %781 = vmatprep.subr.mxu0 0.0
    %782 = vmatpush1.msra.mxu0 0.0
    %783 = vmatprep.subr.mxu0 0.0
    %784 = vmatpush1.msra.mxu0 0.0
    %785 = vmatprep.mubr.f32.mxu0 0.0
    %786 = vmatmul.mubr.f32.gmra.mrb[0].mxu0 %v74
    %v787 = vpop.f32.mrb[0].mxu0
    %v788 = vadd.f32 0.0, %v787
    %v789 = vpop.f32.mrb[0].mxu0
    %790 = vdwg.mxu0
    %791 = vmatprep.subr.mxu0 0.0
    %792 = vmatpush1.msra.mxu0 %v688
    %793 = vmatprep.subr.mxu0 0.0
    %794 = vmatpush1.msra.mxu0 %v689
    %795 = vmatprep.subr.mxu0 0.0
    %796 = vmatpush1.msra.mxu0 %v690
    %797 = vmatprep.subr.mxu0 0.0
    %798 = vmatpush1.msra.mxu0 %v691
    %799 = vmatprep.subr.mxu0 0.0
    %800 = vmatpush1.msra.mxu0 %v692
    %801 = vmatprep.subr.mxu0 0.0
    %802 = vmatpush1.msra.mxu0 %v693
    %803 = vmatprep.subr.mxu0 0.0
    %804 = vmatpush1.msra.mxu0 %v694
    %805 = vmatprep.subr.mxu0 0.0
    %806 = vmatpush1.msra.mxu0 %v695
    %807 = vmatprep.subr.mxu0 0.0
    %808 = vmatpush1.msra.mxu0 %v696
    %809 = vmatprep.subr.mxu0 0.0
    %810 = vmatpush1.msra.mxu0 %v697
    %811 = vmatprep.subr.mxu0 0.0
    %812 = vmatpush1.msra.mxu0 %v698
    %813 = vmatprep.subr.mxu0 0.0
    %814 = vmatpush1.msra.mxu0 %v699
    %815 = vmatprep.subr.mxu0 0.0
    %816 = vmatpush1.msra.mxu0 %v700
    %817 = vmatprep.subr.mxu0 0.0
    %818 = vmatpush1.msra.mxu0 %v701
    %819 = vmatprep.subr.mxu0 0.0
    %820 = vmatpush1.msra.mxu0 %v702
    %821 = vmatprep.subr.mxu0 0.0
    %822 = vmatpush1.msra.mxu0 %v703
    %823 = vmatprep.subr.mxu0 0.0
    %824 = vmatpush1.msra.mxu0 0.0
    %825 = vmatprep.subr.mxu0 0.0
    %826 = vmatpush1.msra.mxu0 0.0
    %827 = vmatprep.subr.mxu0 0.0
    %828 = vmatpush1.msra.mxu0 0.0
    %829 = vmatprep.subr.mxu0 0.0
    %830 = vmatpush1.msra.mxu0 0.0
    %831 = vmatprep.subr.mxu0 0.0
    %832 = vmatpush1.msra.mxu0 0.0
    %833 = vmatprep.subr.mxu0 0.0
    %834 = vmatpush1.msra.mxu0 0.0
    %835 = vmatprep.subr.mxu0 0.0
    %836 = vmatpush1.msra.mxu0 0.0
    %837 = vmatprep.subr.mxu0 0.0
    %838 = vmatpush1.msra.mxu0 0.0
    %839 = vmatprep.subr.mxu0 0.0
    %840 = vmatpush1.msra.mxu0 0.0
    %841 = vmatprep.subr.mxu0 0.0
    %842 = vmatpush1.msra.mxu0 0.0
    %843 = vmatprep.subr.mxu0 0.0
    %844 = vmatpush1.msra.mxu0 0.0
    %845 = vmatprep.subr.mxu0 0.0
    %846 = vmatpush1.msra.mxu0 0.0
    %847 = vmatprep.subr.mxu0 0.0
    %848 = vmatpush1.msra.mxu0 0.0
    %849 = vmatprep.subr.mxu0 0.0
    %850 = vmatpush1.msra.mxu0 0.0
    %851 = vmatprep.subr.mxu0 0.0
    %852 = vmatpush1.msra.mxu0 0.0
    %853 = vmatprep.subr.mxu0 0.0
    %854 = vmatpush1.msra.mxu0 0.0
    %855 = vmatprep.mubr.f32.mxu0 0.0
    %856 = vmatmul.mubr.f32.gmra.mrb[0].mxu0 %v683
    %v857 = vpop.f32.mrb[0].mxu0
    %v858 = vadd.f32 %v788, %v857
    %v859 = vpop.f32.mrb[0].mxu0
    %860 = vdwg.mxu0
    %s861 = scalar_lea.vmem [#allocation7], 1024
    %v862 = vld [vmem:[%s861] sm:$0xff]
    %v863 = vld [vmem:[%s861 + $0x8] sm:$0xff]
    %v864 = vld [vmem:[%s861 + $0x10] sm:$0xff]
    %v865 = vld [vmem:[%s861 + $0x18] sm:$0xff]
    %v866 = vld [vmem:[%s861 + $0x20] sm:$0xff]
    %v867 = vld [vmem:[%s861 + $0x28] sm:$0xff]
    %v868 = vld [vmem:[%s861 + $0x30] sm:$0xff]
    %v869 = vld [vmem:[%s861 + $0x38] sm:$0xff]
    %v870 = vld [vmem:[%s861 + $0x40] sm:$0xff]
    %v871 = vld [vmem:[%s861 + $0x48] sm:$0xff]
    %v872 = vld [vmem:[%s861 + $0x50] sm:$0xff]
    %v873 = vld [vmem:[%s861 + $0x58] sm:$0xff]
    %v874 = vld [vmem:[%s861 + $0x60] sm:$0xff]
    %v875 = vld [vmem:[%s861 + $0x68] sm:$0xff]
    %v876 = vld [vmem:[%s861 + $0x70] sm:$0xff]
    %v877 = vld [vmem:[%s861 + $0x78] sm:$0xff]
    %878 = vmatprep.subr.mxu0 0.0
    %879 = vmatpush1.msra.mxu0 %v862
    %880 = vmatprep.subr.mxu0 0.0
    %881 = vmatpush1.msra.mxu0 %v863
    %882 = vmatprep.subr.mxu0 0.0
    %883 = vmatpush1.msra.mxu0 %v864
    %884 = vmatprep.subr.mxu0 0.0
    %885 = vmatpush1.msra.mxu0 %v865
    %886 = vmatprep.subr.mxu0 0.0
    %887 = vmatpush1.msra.mxu0 %v866
    %888 = vmatprep.subr.mxu0 0.0
    %889 = vmatpush1.msra.mxu0 %v867
    %890 = vmatprep.subr.mxu0 0.0
    %891 = vmatpush1.msra.mxu0 %v868
    %892 = vmatprep.subr.mxu0 0.0
    %893 = vmatpush1.msra.mxu0 %v869
    %894 = vmatprep.subr.mxu0 0.0
    %895 = vmatpush1.msra.mxu0 %v870
    %896 = vmatprep.subr.mxu0 0.0
    %897 = vmatpush1.msra.mxu0 %v871
    %898 = vmatprep.subr.mxu0 0.0
    %899 = vmatpush1.msra.mxu0 %v872
    %900 = vmatprep.subr.mxu0 0.0
    %901 = vmatpush1.msra.mxu0 %v873
    %902 = vmatprep.subr.mxu0 0.0
    %903 = vmatpush1.msra.mxu0 %v874
    %904 = vmatprep.subr.mxu0 0.0
    %905 = vmatpush1.msra.mxu0 %v875
    %906 = vmatprep.subr.mxu0 0.0
    %907 = vmatpush1.msra.mxu0 %v876
    %908 = vmatprep.subr.mxu0 0.0
    %909 = vmatpush1.msra.mxu0 %v877
    %910 = vmatprep.subr.mxu0 0.0
    %911 = vmatpush1.msra.mxu0 0.0
    %912 = vmatprep.subr.mxu0 0.0
    %913 = vmatpush1.msra.mxu0 0.0
    %914 = vmatprep.subr.mxu0 0.0
    %915 = vmatpush1.msra.mxu0 0.0
    %916 = vmatprep.subr.mxu0 0.0
    %917 = vmatpush1.msra.mxu0 0.0
    %918 = vmatprep.subr.mxu0 0.0
    %919 = vmatpush1.msra.mxu0 0.0
    %920 = vmatprep.subr.mxu0 0.0
    %921 = vmatpush1.msra.mxu0 0.0
    %922 = vmatprep.subr.mxu0 0.0
    %923 = vmatpush1.msra.mxu0 0.0
    %924 = vmatprep.subr.mxu0 0.0
    %925 = vmatpush1.msra.mxu0 0.0
    %926 = vmatprep.subr.mxu0 0.0
    %927 = vmatpush1.msra.mxu0 0.0
    %928 = vmatprep.subr.mxu0 0.0
    %929 = vmatpush1.msra.mxu0 0.0
    %930 = vmatprep.subr.mxu0 0.0
    %931 = vmatpush1.msra.mxu0 0.0
    %932 = vmatprep.subr.mxu0 0.0
    %933 = vmatpush1.msra.mxu0 0.0
    %934 = vmatprep.subr.mxu0 0.0
    %935 = vmatpush1.msra.mxu0 0.0
    %936 = vmatprep.subr.mxu0 0.0
    %937 = vmatpush1.msra.mxu0 0.0
    %938 = vmatprep.subr.mxu0 0.0
    %939 = vmatpush1.msra.mxu0 0.0
    %940 = vmatprep.subr.mxu0 0.0
    %941 = vmatpush1.msra.mxu0 0.0
    %942 = vmatprep.mubr.f32.mxu0 0.0
    %943 = vmatmul.mubr.f32.gmra.mrb[0].mxu0 %v686
    %v944 = vpop.f32.mrb[0].mxu0
    %v945 = vadd.f32 0.0, %v944
    %v946 = vpop.f32.mrb[0].mxu0
    %947 = vdwg.mxu0
    %v948 = vadd.f32 %v858, %v945
    %v949 = vlaneseq
    %v950 = vshrl.u32 %v949, 7
    %v951 = vsub.s32 2, %v950
    %v952 = vrot.slane %v75, %v951
    %v953 = vadd.f32 %v948, %v952
    %v954 = vmax.f32 %v953, 0.0
    %v955 = vrot.slane %v954, 7
    %v956 = vsel %vm79, 0.0, %v955
    %v957 = vrot.slane %v954, 1
    %v958 = vsel %vm684, 0.0, %v957
    %s959 = scalar_lea.vmem [#allocation7], 1152
    %v960 = vld [vmem:[%s959] sm:$0xff]
    %v961 = vld [vmem:[%s959 + $0x8] sm:$0xff]
    %v962 = vld [vmem:[%s959 + $0x10] sm:$0xff]
    %v963 = vld [vmem:[%s959 + $0x18] sm:$0xff]
    %v964 = vld [vmem:[%s959 + $0x20] sm:$0xff]
    %v965 = vld [vmem:[%s959 + $0x28] sm:$0xff]
    %v966 = vld [vmem:[%s959 + $0x30] sm:$0xff]
    %v967 = vld [vmem:[%s959 + $0x38] sm:$0xff]
    %v968 = vld [vmem:[%s959 + $0x40] sm:$0xff]
    %v969 = vld [vmem:[%s959 + $0x48] sm:$0xff]
    %v970 = vld [vmem:[%s959 + $0x50] sm:$0xff]
    %v971 = vld [vmem:[%s959 + $0x58] sm:$0xff]
    %v972 = vld [vmem:[%s959 + $0x60] sm:$0xff]
    %v973 = vld [vmem:[%s959 + $0x68] sm:$0xff]
    %v974 = vld [vmem:[%s959 + $0x70] sm:$0xff]
    %v975 = vld [vmem:[%s959 + $0x78] sm:$0xff]
    %s976 = scalar_lea.vmem [#allocation7], 1280
    %v977 = vld [vmem:[%s976] sm:$0xff]
    %v978 = vld [vmem:[%s976 + $0x8] sm:$0xff]
    %v979 = vld [vmem:[%s976 + $0x10] sm:$0xff]
    %v980 = vld [vmem:[%s976 + $0x18] sm:$0xff]
    %v981 = vld [vmem:[%s976 + $0x20] sm:$0xff]
    %v982 = vld [vmem:[%s976 + $0x28] sm:$0xff]
    %v983 = vld [vmem:[%s976 + $0x30] sm:$0xff]
    %v984 = vld [vmem:[%s976 + $0x38] sm:$0xff]
    %v985 = vld [vmem:[%s976 + $0x40] sm:$0xff]
    %v986 = vld [vmem:[%s976 + $0x48] sm:$0xff]
    %v987 = vld [vmem:[%s976 + $0x50] sm:$0xff]
    %v988 = vld [vmem:[%s976 + $0x58] sm:$0xff]
    %v989 = vld [vmem:[%s976 + $0x60] sm:$0xff]
    %v990 = vld [vmem:[%s976 + $0x68] sm:$0xff]
    %v991 = vld [vmem:[%s976 + $0x70] sm:$0xff]
    %v992 = vld [vmem:[%s976 + $0x78] sm:$0xff]
    %993 = vmatprep.subr.mxu0 0.0
    %994 = vmatpush1.msra.mxu0 %v977
    %995 = vmatprep.subr.mxu0 0.0
    %996 = vmatpush1.msra.mxu0 %v978
    %997 = vmatprep.subr.mxu0 0.0
    %998 = vmatpush1.msra.mxu0 %v979
    %999 = vmatprep.subr.mxu0 0.0
    %1000 = vmatpush1.msra.mxu0 %v980
    %1001 = vmatprep.subr.mxu0 0.0
    %1002 = vmatpush1.msra.mxu0 %v981
    %1003 = vmatprep.subr.mxu0 0.0
    %1004 = vmatpush1.msra.mxu0 %v982
    %1005 = vmatprep.subr.mxu0 0.0
    %1006 = vmatpush1.msra.mxu0 %v983
    %1007 = vmatprep.subr.mxu0 0.0
    %1008 = vmatpush1.msra.mxu0 %v984
    %1009 = vmatprep.subr.mxu0 0.0
    %1010 = vmatpush1.msra.mxu0 %v985
    %1011 = vmatprep.subr.mxu0 0.0
    %1012 = vmatpush1.msra.mxu0 %v986
    %1013 = vmatprep.subr.mxu0 0.0
    %1014 = vmatpush1.msra.mxu0 %v987
    %1015 = vmatprep.subr.mxu0 0.0
    %1016 = vmatpush1.msra.mxu0 %v988
    %1017 = vmatprep.subr.mxu0 0.0
    %1018 = vmatpush1.msra.mxu0 %v989
    %1019 = vmatprep.subr.mxu0 0.0
    %1020 = vmatpush1.msra.mxu0 %v990
    %1021 = vmatprep.subr.mxu0 0.0
    %1022 = vmatpush1.msra.mxu0 %v991
    %1023 = vmatprep.subr.mxu0 0.0
    %1024 = vmatpush1.msra.mxu0 %v992
    %1025 = vmatprep.subr.mxu0 0.0
    %1026 = vmatpush1.msra.mxu0 0.0
    %1027 = vmatprep.subr.mxu0 0.0
    %1028 = vmatpush1.msra.mxu0 0.0
    %1029 = vmatprep.subr.mxu0 0.0
    %1030 = vmatpush1.msra.mxu0 0.0
    %1031 = vmatprep.subr.mxu0 0.0
    %1032 = vmatpush1.msra.mxu0 0.0
    %1033 = vmatprep.subr.mxu0 0.0
    %1034 = vmatpush1.msra.mxu0 0.0
    %1035 = vmatprep.subr.mxu0 0.0
    %1036 = vmatpush1.msra.mxu0 0.0
    %1037 = vmatprep.subr.mxu0 0.0
    %1038 = vmatpush1.msra.mxu0 0.0
    %1039 = vmatprep.subr.mxu0 0.0
    %1040 = vmatpush1.msra.mxu0 0.0
    %1041 = vmatprep.subr.mxu0 0.0
    %1042 = vmatpush1.msra.mxu0 0.0
    %1043 = vmatprep.subr.mxu0 0.0
    %1044 = vmatpush1.msra.mxu0 0.0
    %1045 = vmatprep.subr.mxu0 0.0
    %1046 = vmatpush1.msra.mxu0 0.0
    %1047 = vmatprep.subr.mxu0 0.0
    %1048 = vmatpush1.msra.mxu0 0.0
    %1049 = vmatprep.subr.mxu0 0.0
    %1050 = vmatpush1.msra.mxu0 0.0
    %1051 = vmatprep.subr.mxu0 0.0
    %1052 = vmatpush1.msra.mxu0 0.0
    %1053 = vmatprep.subr.mxu0 0.0
    %1054 = vmatpush1.msra.mxu0 0.0
    %1055 = vmatprep.subr.mxu0 0.0
    %1056 = vmatpush1.msra.mxu0 0.0
    %1057 = vmatprep.mubr.f32.mxu0 0.0
    %1058 = vmatmul.mubr.f32.gmra.mrb[0].mxu0 %v954
    %v1059 = vpop.f32.mrb[0].mxu0
    %v1060 = vadd.f32 0.0, %v1059
    %v1061 = vpop.f32.mrb[0].mxu0
    %1062 = vdwg.mxu0
    %1063 = vmatprep.subr.mxu0 0.0
    %1064 = vmatpush1.msra.mxu0 %v960
    %1065 = vmatprep.subr.mxu0 0.0
    %1066 = vmatpush1.msra.mxu0 %v961
    %1067 = vmatprep.subr.mxu0 0.0
    %1068 = vmatpush1.msra.mxu0 %v962
    %1069 = vmatprep.subr.mxu0 0.0
    %1070 = vmatpush1.msra.mxu0 %v963
    %1071 = vmatprep.subr.mxu0 0.0
    %1072 = vmatpush1.msra.mxu0 %v964
    %1073 = vmatprep.subr.mxu0 0.0
    %1074 = vmatpush1.msra.mxu0 %v965
    %1075 = vmatprep.subr.mxu0 0.0
    %1076 = vmatpush1.msra.mxu0 %v966
    %1077 = vmatprep.subr.mxu0 0.0
    %1078 = vmatpush1.msra.mxu0 %v967
    %1079 = vmatprep.subr.mxu0 0.0
    %1080 = vmatpush1.msra.mxu0 %v968
    %1081 = vmatprep.subr.mxu0 0.0
    %1082 = vmatpush1.msra.mxu0 %v969
    %1083 = vmatprep.subr.mxu0 0.0
    %1084 = vmatpush1.msra.mxu0 %v970
    %1085 = vmatprep.subr.mxu0 0.0
    %1086 = vmatpush1.msra.mxu0 %v971
    %1087 = vmatprep.subr.mxu0 0.0
    %1088 = vmatpush1.msra.mxu0 %v972
    %1089 = vmatprep.subr.mxu0 0.0
    %1090 = vmatpush1.msra.mxu0 %v973
    %1091 = vmatprep.subr.mxu0 0.0
    %1092 = vmatpush1.msra.mxu0 %v974
    %1093 = vmatprep.subr.mxu0 0.0
    %1094 = vmatpush1.msra.mxu0 %v975
    %1095 = vmatprep.subr.mxu0 0.0
    %1096 = vmatpush1.msra.mxu0 0.0
    %1097 = vmatprep.subr.mxu0 0.0
    %1098 = vmatpush1.msra.mxu0 0.0
    %1099 = vmatprep.subr.mxu0 0.0
    %1100 = vmatpush1.msra.mxu0 0.0
    %1101 = vmatprep.subr.mxu0 0.0
    %1102 = vmatpush1.msra.mxu0 0.0
    %1103 = vmatprep.subr.mxu0 0.0
    %1104 = vmatpush1.msra.mxu0 0.0
    %1105 = vmatprep.subr.mxu0 0.0
    %1106 = vmatpush1.msra.mxu0 0.0
    %1107 = vmatprep.subr.mxu0 0.0
    %1108 = vmatpush1.msra.mxu0 0.0
    %1109 = vmatprep.subr.mxu0 0.0
    %1110 = vmatpush1.msra.mxu0 0.0
    %1111 = vmatprep.subr.mxu0 0.0
    %1112 = vmatpush1.msra.mxu0 0.0
    %1113 = vmatprep.subr.mxu0 0.0
    %1114 = vmatpush1.msra.mxu0 0.0
    %1115 = vmatprep.subr.mxu0 0.0
    %1116 = vmatpush1.msra.mxu0 0.0
    %1117 = vmatprep.subr.mxu0 0.0
    %1118 = vmatpush1.msra.mxu0 0.0
    %1119 = vmatprep.subr.mxu0 0.0
    %1120 = vmatpush1.msra.mxu0 0.0
    %1121 = vmatprep.subr.mxu0 0.0
    %1122 = vmatpush1.msra.mxu0 0.0
    %1123 = vmatprep.subr.mxu0 0.0
    %1124 = vmatpush1.msra.mxu0 0.0
    %1125 = vmatprep.subr.mxu0 0.0
    %1126 = vmatpush1.msra.mxu0 0.0
    %1127 = vmatprep.mubr.f32.mxu0 0.0
    %1128 = vmatmul.mubr.f32.gmra.mrb[0].mxu0 %v956
    %v1129 = vpop.f32.mrb[0].mxu0
    %v1130 = vadd.f32 %v1060, %v1129
    %v1131 = vpop.f32.mrb[0].mxu0
    %1132 = vdwg.mxu0
    %s1133 = scalar_lea.vmem [#allocation7], 1408
    %v1134 = vld [vmem:[%s1133] sm:$0xff]
    %v1135 = vld [vmem:[%s1133 + $0x8] sm:$0xff]
    %v1136 = vld [vmem:[%s1133 + $0x10] sm:$0xff]
    %v1137 = vld [vmem:[%s1133 + $0x18] sm:$0xff]
    %v1138 = vld [vmem:[%s1133 + $0x20] sm:$0xff]
    %v1139 = vld [vmem:[%s1133 + $0x28] sm:$0xff]
    %v1140 = vld [vmem:[%s1133 + $0x30] sm:$0xff]
    %v1141 = vld [vmem:[%s1133 + $0x38] sm:$0xff]
    %v1142 = vld [vmem:[%s1133 + $0x40] sm:$0xff]
    %v1143 = vld [vmem:[%s1133 + $0x48] sm:$0xff]
    %v1144 = vld [vmem:[%s1133 + $0x50] sm:$0xff]
    %v1145 = vld [vmem:[%s1133 + $0x58] sm:$0xff]
    %v1146 = vld [vmem:[%s1133 + $0x60] sm:$0xff]
    %v1147 = vld [vmem:[%s1133 + $0x68] sm:$0xff]
    %v1148 = vld [vmem:[%s1133 + $0x70] sm:$0xff]
    %v1149 = vld [vmem:[%s1133 + $0x78] sm:$0xff]
    %1150 = vmatprep.subr.mxu0 0.0
    %1151 = vmatpush1.msra.mxu0 %v1134
    %1152 = vmatprep.subr.mxu0 0.0
    %1153 = vmatpush1.msra.mxu0 %v1135
    %1154 = vmatprep.subr.mxu0 0.0
    %1155 = vmatpush1.msra.mxu0 %v1136
    %1156 = vmatprep.subr.mxu0 0.0
    %1157 = vmatpush1.msra.mxu0 %v1137
    %1158 = vmatprep.subr.mxu0 0.0
    %1159 = vmatpush1.msra.mxu0 %v1138
    %1160 = vmatprep.subr.mxu0 0.0
    %1161 = vmatpush1.msra.mxu0 %v1139
    %1162 = vmatprep.subr.mxu0 0.0
    %1163 = vmatpush1.msra.mxu0 %v1140
    %1164 = vmatprep.subr.mxu0 0.0
    %1165 = vmatpush1.msra.mxu0 %v1141
    %1166 = vmatprep.subr.mxu0 0.0
    %1167 = vmatpush1.msra.mxu0 %v1142
    %1168 = vmatprep.subr.mxu0 0.0
    %1169 = vmatpush1.msra.mxu0 %v1143
    %1170 = vmatprep.subr.mxu0 0.0
    %1171 = vmatpush1.msra.mxu0 %v1144
    %1172 = vmatprep.subr.mxu0 0.0
    %1173 = vmatpush1.msra.mxu0 %v1145
    %1174 = vmatprep.subr.mxu0 0.0
    %1175 = vmatpush1.msra.mxu0 %v1146
    %1176 = vmatprep.subr.mxu0 0.0
    %1177 = vmatpush1.msra.mxu0 %v1147
    %1178 = vmatprep.subr.mxu0 0.0
    %1179 = vmatpush1.msra.mxu0 %v1148
    %1180 = vmatprep.subr.mxu0 0.0
    %1181 = vmatpush1.msra.mxu0 %v1149
    %1182 = vmatprep.subr.mxu0 0.0
    %1183 = vmatpush1.msra.mxu0 0.0
    %1184 = vmatprep.subr.mxu0 0.0
    %1185 = vmatpush1.msra.mxu0 0.0
    %1186 = vmatprep.subr.mxu0 0.0
    %1187 = vmatpush1.msra.mxu0 0.0
    %1188 = vmatprep.subr.mxu0 0.0
    %1189 = vmatpush1.msra.mxu0 0.0
    %1190 = vmatprep.subr.mxu0 0.0
    %1191 = vmatpush1.msra.mxu0 0.0
    %1192 = vmatprep.subr.mxu0 0.0
    %1193 = vmatpush1.msra.mxu0 0.0
    %1194 = vmatprep.subr.mxu0 0.0
    %1195 = vmatpush1.msra.mxu0 0.0
    %1196 = vmatprep.subr.mxu0 0.0
    %1197 = vmatpush1.msra.mxu0 0.0
    %1198 = vmatprep.subr.mxu0 0.0
    %1199 = vmatpush1.msra.mxu0 0.0
    %1200 = vmatprep.subr.mxu0 0.0
    %1201 = vmatpush1.msra.mxu0 0.0
    %1202 = vmatprep.subr.mxu0 0.0
    %1203 = vmatpush1.msra.mxu0 0.0
    %1204 = vmatprep.subr.mxu0 0.0
    %1205 = vmatpush1.msra.mxu0 0.0
    %1206 = vmatprep.subr.mxu0 0.0
    %1207 = vmatpush1.msra.mxu0 0.0
    %1208 = vmatprep.subr.mxu0 0.0
    %1209 = vmatpush1.msra.mxu0 0.0
    %1210 = vmatprep.subr.mxu0 0.0
    %1211 = vmatpush1.msra.mxu0 0.0
    %1212 = vmatprep.subr.mxu0 0.0
    %1213 = vmatpush1.msra.mxu0 0.0
    %1214 = vmatprep.mubr.f32.mxu0 0.0
    %1215 = vmatmul.mubr.f32.gmra.mrb[0].mxu0 %v958
    %v1216 = vpop.f32.mrb[0].mxu0
    %v1217 = vadd.f32 0.0, %v1216
    %v1218 = vpop.f32.mrb[0].mxu0
    %1219 = vdwg.mxu0
    %v1220 = vadd.f32 %v1130, %v1217
    %v1221 = vlaneseq
    %v1222 = vshrl.u32 %v1221, 7
    %v1223 = vsub.s32 3, %v1222
    %v1224 = vrot.slane %v75, %v1223
    %v1225 = vadd.f32 %v1220, %v1224
    %v1226 = vadd.f32 %v1225, %v74
    %v1227 = vmax.f32 %v1226, 0.0
    %s1228 = scalar_lea.vmem [#allocation7], 1536
    %v1229 = vld [vmem:[%s1228] sm:$0xff]
    %v1230 = vld [vmem:[%s1228 + $0x8] sm:$0xff]
    %v1231 = vld [vmem:[%s1228 + $0x10] sm:$0xff]
    %v1232 = vld [vmem:[%s1228 + $0x18] sm:$0xff]
    %v1233 = vld [vmem:[%s1228 + $0x20] sm:$0xff]
    %v1234 = vld [vmem:[%s1228 + $0x28] sm:$0xff]
    %v1235 = vld [vmem:[%s1228 + $0x30] sm:$0xff]
    %v1236 = vld [vmem:[%s1228 + $0x38] sm:$0xff]
    %v1237 = vld [vmem:[%s1228 + $0x40] sm:$0xff]
    %v1238 = vld [vmem:[%s1228 + $0x48] sm:$0xff]
    %v1239 = vld [vmem:[%s1228 + $0x50] sm:$0xff]
    %v1240 = vld [vmem:[%s1228 + $0x58] sm:$0xff]
    %v1241 = vld [vmem:[%s1228 + $0x60] sm:$0xff]
    %v1242 = vld [vmem:[%s1228 + $0x68] sm:$0xff]
    %v1243 = vld [vmem:[%s1228 + $0x70] sm:$0xff]
    %v1244 = vld [vmem:[%s1228 + $0x78] sm:$0xff]
    %v1245 = vlaneseq
    %v1246 = vshrl.u32 %v1245, 7
    %v1247 = vsub.s32 4, %v1246
    %v1248 = vrot.slane %v75, %v1247
    %1249 = vmatprep.subr.mxu0 0.0
    %1250 = vmatpush1.msra.mxu0 %v1229
    %1251 = vmatprep.subr.mxu0 0.0
    %1252 = vmatpush1.msra.mxu0 %v1230
    %1253 = vmatprep.subr.mxu0 0.0
    %1254 = vmatpush1.msra.mxu0 %v1231
    %1255 = vmatprep.subr.mxu0 0.0
    %1256 = vmatpush1.msra.mxu0 %v1232
    %1257 = vmatprep.subr.mxu0 0.0
    %1258 = vmatpush1.msra.mxu0 %v1233
    %1259 = vmatprep.subr.mxu0 0.0
    %1260 = vmatpush1.msra.mxu0 %v1234
    %1261 = vmatprep.subr.mxu0 0.0
    %1262 = vmatpush1.msra.mxu0 %v1235
    %1263 = vmatprep.subr.mxu0 0.0
    %1264 = vmatpush1.msra.mxu0 %v1236
    %1265 = vmatprep.subr.mxu0 0.0
    %1266 = vmatpush1.msra.mxu0 %v1237
    %1267 = vmatprep.subr.mxu0 0.0
    %1268 = vmatpush1.msra.mxu0 %v1238
    %1269 = vmatprep.subr.mxu0 0.0
    %1270 = vmatpush1.msra.mxu0 %v1239
    %1271 = vmatprep.subr.mxu0 0.0
    %1272 = vmatpush1.msra.mxu0 %v1240
    %1273 = vmatprep.subr.mxu0 0.0
    %1274 = vmatpush1.msra.mxu0 %v1241
    %1275 = vmatprep.subr.mxu0 0.0
    %1276 = vmatpush1.msra.mxu0 %v1242
    %1277 = vmatprep.subr.mxu0 0.0
    %1278 = vmatpush1.msra.mxu0 %v1243
    %1279 = vmatprep.subr.mxu0 0.0
    %1280 = vmatpush1.msra.mxu0 %v1244
    %1281 = vmatprep.subr.mxu0 0.0
    %1282 = vmatpush1.msra.mxu0 0.0
    %1283 = vmatprep.subr.mxu0 0.0
    %1284 = vmatpush1.msra.mxu0 0.0
    %1285 = vmatprep.subr.mxu0 0.0
    %1286 = vmatpush1.msra.mxu0 0.0
    %1287 = vmatprep.subr.mxu0 0.0
    %1288 = vmatpush1.msra.mxu0 0.0
    %1289 = vmatprep.subr.mxu0 0.0
    %1290 = vmatpush1.msra.mxu0 0.0
    %1291 = vmatprep.subr.mxu0 0.0
    %1292 = vmatpush1.msra.mxu0 0.0
    %1293 = vmatprep.subr.mxu0 0.0
    %1294 = vmatpush1.msra.mxu0 0.0
    %1295 = vmatprep.subr.mxu0 0.0
    %1296 = vmatpush1.msra.mxu0 0.0
    %1297 = vmatprep.subr.mxu0 0.0
    %1298 = vmatpush1.msra.mxu0 0.0
    %1299 = vmatprep.subr.mxu0 0.0
    %1300 = vmatpush1.msra.mxu0 0.0
    %1301 = vmatprep.subr.mxu0 0.0
    %1302 = vmatpush1.msra.mxu0 0.0
    %1303 = vmatprep.subr.mxu0 0.0
    %1304 = vmatpush1.msra.mxu0 0.0
    %1305 = vmatprep.subr.mxu0 0.0
    %1306 = vmatpush1.msra.mxu0 0.0
    %1307 = vmatprep.subr.mxu0 0.0
    %1308 = vmatpush1.msra.mxu0 0.0
    %1309 = vmatprep.subr.mxu0 0.0
    %1310 = vmatpush1.msra.mxu0 0.0
    %1311 = vmatprep.subr.mxu0 0.0
    %1312 = vmatpush1.msra.mxu0 0.0
    %1313 = vmatprep.mubr.f32.mxu0 0.0
    %1314 = vmatmul.mubr.f32.gmra.mrb[0].mxu0 %v1227
    %v1315 = vpop.f32.mrb[0].mxu0
    %v1316 = vadd.f32 %v1248, %v1315
    %v1317 = vpop.f32.mrb[0].mxu0
    %1318 = vdwg.mxu0
    %v1320 = vcombine.high %v1316, %v1316
    %v1322 = vunpack.c.l.s4 1966171168
    %v1323 = vunpack.c.0.s8 %v1322
    %v1324 = vlaneseq
    %v1325 = vshrl.u32 %v1324, 7
    %v1326 = vsub.s32 %v1323, %v1325
    %v1327 = vrot.slane %v1316, %v1326
    %v1329 = vunpack.c.l.s4 1966171168
    %v1330 = vunpack.c.0.s8 %v1329
    %v1331 = vlaneseq
    %v1332 = vshrl.u32 %v1331, 7
    %v1333 = vsub.s32 %v1330, %v1332
    %v1334 = vrot.slane %v1320, %v1333
    %v1335 = vcombine.high %v1327, %v1327
    %v1336 = vcombine.high %v1334, %v1334
    %v1338 = vunpack.c.l.s4 1966171168
    %v1339 = vunpack.c.0.s8 %v1338
    %v1340 = vlaneseq
    %v1341 = vshrl.u32 %v1340, 7
    %v1342 = vsub.s32 %v1339, %v1341
    %v1343 = vrot.slane %v1327, %v1342
    %v1345 = vunpack.c.l.s4 1966171168
    %v1346 = vunpack.c.0.s8 %v1345
    %v1347 = vlaneseq
    %v1348 = vshrl.u32 %v1347, 7
    %v1349 = vsub.s32 %v1346, %v1348
    %v1350 = vrot.slane %v1334, %v1349
    %v1352 = vunpack.c.l.s4 1966171168
    %v1353 = vunpack.c.0.s8 %v1352
    %v1354 = vlaneseq
    %v1355 = vshrl.u32 %v1354, 7
    %v1356 = vsub.s32 %v1353, %v1355
    %v1357 = vrot.slane %v1335, %v1356
    %v1359 = vunpack.c.l.s4 1966171168
    %v1360 = vunpack.c.0.s8 %v1359
    %v1361 = vlaneseq
    %v1362 = vshrl.u32 %v1361, 7
    %v1363 = vsub.s32 %v1360, %v1362
    %v1364 = vrot.slane %v1336, %v1363
    %v1365 = vcombine.high %v1343, %v1343
    %v1366 = vcombine.high %v1350, %v1350
    %v1367 = vcombine.high %v1357, %v1357
    %v1368 = vcombine.high %v1364, %v1364
    %v1369 = vlaneseq
    %v1370 = vshrl.u32 %v1369, 7
    %v1371 = vsub.s32 0, %v1370
    %v1372 = vrot.slane %v1343, %v1371
    %v1373 = vlaneseq
    %v1374 = vshrl.u32 %v1373, 7
    %v1375 = vsub.s32 0, %v1374
    %v1376 = vrot.slane %v1357, %v1375
    %v1377 = vlaneseq
    %v1378 = vshrl.u32 %v1377, 7
    %v1379 = vsub.s32 0, %v1378
    %v1380 = vrot.slane %v1365, %v1379
    %v1381 = vlaneseq
    %v1382 = vshrl.u32 %v1381, 7
    %v1383 = vsub.s32 0, %v1382
    %v1384 = vrot.slane %v1367, %v1383
    %v1385 = vlaneseq
    %v1386 = vshrl.u32 %v1385, 7
    %v1387 = vsub.s32 0, %v1386
    %v1388 = vrot.slane %v1350, %v1387
    %v1389 = vlaneseq
    %v1390 = vshrl.u32 %v1389, 7
    %v1391 = vsub.s32 0, %v1390
    %v1392 = vrot.slane %v1364, %v1391
    %v1393 = vlaneseq
    %v1394 = vshrl.u32 %v1393, 7
    %v1395 = vsub.s32 0, %v1394
    %v1396 = vrot.slane %v1366, %v1395
    %v1397 = vlaneseq
    %v1398 = vshrl.u32 %v1397, 7
    %v1399 = vsub.s32 0, %v1398
    %v1400 = vrot.slane %v1368, %v1399
    %v1401 = vcombine.low %v1372, %v1376
    %v1402 = vcombine.low %v1380, %v1384
    %v1404 = vunpack.c.l.s4 1983009808
    %v1405 = vunpack.c.0.s8 %v1404
    %v1406 = vlaneseq
    %v1407 = vshrl.u32 %v1406, 7
    %v1408 = vsub.s32 %v1405, %v1407
    %v1409 = vrot.slane %v1401, %v1408
    %v1411 = vunpack.c.l.s4 1983009808
    %v1412 = vunpack.c.0.s8 %v1411
    %v1413 = vlaneseq
    %v1414 = vshrl.u32 %v1413, 7
    %v1415 = vsub.s32 %v1412, %v1414
    %v1416 = vrot.slane %v1402, %v1415
    %v1417 = vcombine.low %v1409, %v1416
    %v1418 = vcombine.low %v1388, %v1392
    %v1419 = vcombine.low %v1396, %v1400
    %v1421 = vunpack.c.l.s4 1983009808
    %v1422 = vunpack.c.0.s8 %v1421
    %v1423 = vlaneseq
    %v1424 = vshrl.u32 %v1423, 7
    %v1425 = vsub.s32 %v1422, %v1424
    %v1426 = vrot.slane %v1418, %v1425
    %v1428 = vunpack.c.l.s4 1983009808
    %v1429 = vunpack.c.0.s8 %v1428
    %v1430 = vlaneseq
    %v1431 = vshrl.u32 %v1430, 7
    %v1432 = vsub.s32 %v1429, %v1431
    %v1433 = vrot.slane %v1419, %v1432
    %v1434 = vcombine.low %v1426, %v1433
    %v1437 = vadd.f32 %v680, %v1417
    %v1438 = vadd.f32 %v681, %v1434
    %v1439 = vmax.f32 %v1437, 0.0
    %v1440 = vmax.f32 %v1438, 0.0
    %1441 = vst [vmem:[#allocation10] sm:$0xff] %v1439
    %1442 = vst [vmem:[#allocation10 + $0x8] sm:$0xff] %v1440
    %v1445 = vcombine.high %v680, %v680
    %v1447 = vunpack.c.l.s4 1983009808
    %v1448 = vunpack.c.0.s8 %v1447
    %v1449 = vlaneseq
    %v1450 = vshrl.u32 %v1449, 7
    %v1451 = vsub.s32 %v1448, %v1450
    %v1452 = vrot.slane %v680, %v1451
    %v1454 = vunpack.c.l.s4 1983009808
    %v1455 = vunpack.c.0.s8 %v1454
    %v1456 = vlaneseq
    %v1457 = vshrl.u32 %v1456, 7
    %v1458 = vsub.s32 %v1455, %v1457
    %v1459 = vrot.slane %v1445, %v1458
    %v1460 = vcombine.high %v1452, %v1452
    %v1461 = vcombine.high %v1459, %v1459
    %v1462 = vcombine.high %v681, %v681
    %v1464 = vunpack.c.l.s4 1983009808
    %v1465 = vunpack.c.0.s8 %v1464
    %v1466 = vlaneseq
    %v1467 = vshrl.u32 %v1466, 7
    %v1468 = vsub.s32 %v1465, %v1467
    %v1469 = vrot.slane %v681, %v1468
    %v1471 = vunpack.c.l.s4 1983009808
    %v1472 = vunpack.c.0.s8 %v1471
    %v1473 = vlaneseq
    %v1474 = vshrl.u32 %v1473, 7
    %v1475 = vsub.s32 %v1472, %v1474
    %v1476 = vrot.slane %v1462, %v1475
    %v1477 = vcombine.high %v1469, %v1469
    %v1478 = vcombine.high %v1476, %v1476
    %v1479 = vlaneseq
    %v1480 = vshrl.u32 %v1479, 7
    %v1481 = vsub.s32 1, %v1480
    %v1482 = vrot.slane %v1452, %v1481
    %v1483 = vlaneseq
    %v1484 = vshrl.u32 %v1483, 7
    %v1485 = vsub.s32 1, %v1484
    %v1486 = vrot.slane %v1460, %v1485
    %v1487 = vlaneseq
    %v1488 = vshrl.u32 %v1487, 7
    %v1489 = vsub.s32 1, %v1488
    %v1490 = vrot.slane %v1459, %v1489
    %v1491 = vlaneseq
    %v1492 = vshrl.u32 %v1491, 7
    %v1493 = vsub.s32 1, %v1492
    %v1494 = vrot.slane %v1461, %v1493
    %v1495 = vlaneseq
    %v1496 = vshrl.u32 %v1495, 7
    %v1497 = vsub.s32 1, %v1496
    %v1498 = vrot.slane %v1469, %v1497
    %v1499 = vlaneseq
    %v1500 = vshrl.u32 %v1499, 7
    %v1501 = vsub.s32 1, %v1500
    %v1502 = vrot.slane %v1477, %v1501
    %v1503 = vlaneseq
    %v1504 = vshrl.u32 %v1503, 7
    %v1505 = vsub.s32 1, %v1504
    %v1506 = vrot.slane %v1476, %v1505
    %v1507 = vlaneseq
    %v1508 = vshrl.u32 %v1507, 7
    %v1509 = vsub.s32 1, %v1508
    %v1510 = vrot.slane %v1478, %v1509
    %vm1511 = vcmask 1041409
    %v1512 = vsel %vm1511, %v1486, %v1482
    %vm1513 = vcmask 1042434
    %v1514 = vsel %vm1513, %v1490, %v1512
    %vm1515 = vcmask 1043459
    %v1516 = vsel %vm1515, %v1494, %v1514
    %vm1517 = vcmask 1044484
    %v1518 = vsel %vm1517, %v1498, %v1516
    %vm1519 = vcmask 1045509
    %v1520 = vsel %vm1519, %v1502, %v1518
    %vm1521 = vcmask 1046534
    %v1522 = vsel %vm1521, %v1506, %v1520
    %vm1523 = vcmask 1047559
    %v1524 = vsel %vm1523, %v1510, %v1522
    %v1526 = vrot.slane %v1524, 7
    %v1527 = vsel %vm79, 0.0, %v1526
    %s1528 = scalar_lea.vmem [#allocation7], 1664
    %v1529 = vld [vmem:[%s1528] sm:$0xff]
    %v1530 = vld [vmem:[%s1528 + $0x8] sm:$0xff]
    %v1531 = vld [vmem:[%s1528 + $0x10] sm:$0xff]
    %v1532 = vld [vmem:[%s1528 + $0x18] sm:$0xff]
    %v1533 = vld [vmem:[%s1528 + $0x20] sm:$0xff]
    %v1534 = vld [vmem:[%s1528 + $0x28] sm:$0xff]
    %v1535 = vld [vmem:[%s1528 + $0x30] sm:$0xff]
    %v1536 = vld [vmem:[%s1528 + $0x38] sm:$0xff]
    %v1537 = vld [vmem:[%s1528 + $0x40] sm:$0xff]
    %v1538 = vld [vmem:[%s1528 + $0x48] sm:$0xff]
    %v1539 = vld [vmem:[%s1528 + $0x50] sm:$0xff]
    %v1540 = vld [vmem:[%s1528 + $0x58] sm:$0xff]
    %v1541 = vld [vmem:[%s1528 + $0x60] sm:$0xff]
    %v1542 = vld [vmem:[%s1528 + $0x68] sm:$0xff]
    %v1543 = vld [vmem:[%s1528 + $0x70] sm:$0xff]
    %v1544 = vld [vmem:[%s1528 + $0x78] sm:$0xff]
    %s1545 = scalar_lea.vmem [#allocation7], 1792
    %v1546 = vld [vmem:[%s1545] sm:$0xff]
    %v1547 = vld [vmem:[%s1545 + $0x8] sm:$0xff]
    %v1548 = vld [vmem:[%s1545 + $0x10] sm:$0xff]
    %v1549 = vld [vmem:[%s1545 + $0x18] sm:$0xff]
    %v1550 = vld [vmem:[%s1545 + $0x20] sm:$0xff]
    %v1551 = vld [vmem:[%s1545 + $0x28] sm:$0xff]
    %v1552 = vld [vmem:[%s1545 + $0x30] sm:$0xff]
    %v1553 = vld [vmem:[%s1545 + $0x38] sm:$0xff]
    %v1554 = vld [vmem:[%s1545 + $0x40] sm:$0xff]
    %v1555 = vld [vmem:[%s1545 + $0x48] sm:$0xff]
    %v1556 = vld [vmem:[%s1545 + $0x50] sm:$0xff]
    %v1557 = vld [vmem:[%s1545 + $0x58] sm:$0xff]
    %v1558 = vld [vmem:[%s1545 + $0x60] sm:$0xff]
    %v1559 = vld [vmem:[%s1545 + $0x68] sm:$0xff]
    %v1560 = vld [vmem:[%s1545 + $0x70] sm:$0xff]
    %v1561 = vld [vmem:[%s1545 + $0x78] sm:$0xff]
    %v1562 = vlaneseq
    %v1563 = vshrl.u32 %v1562, 7
    %v1564 = vsub.s32 0, %v1563
    %v1565 = vrot.slane %v1452, %v1564
    %v1566 = vlaneseq
    %v1567 = vshrl.u32 %v1566, 7
    %v1568 = vsub.s32 0, %v1567
    %v1569 = vrot.slane %v1460, %v1568
    %v1570 = vlaneseq
    %v1571 = vshrl.u32 %v1570, 7
    %v1572 = vsub.s32 0, %v1571
    %v1573 = vrot.slane %v1459, %v1572
    %v1574 = vlaneseq
    %v1575 = vshrl.u32 %v1574, 7
    %v1576 = vsub.s32 0, %v1575
    %v1577 = vrot.slane %v1461, %v1576
    %v1578 = vlaneseq
    %v1579 = vshrl.u32 %v1578, 7
    %v1580 = vsub.s32 0, %v1579
    %v1581 = vrot.slane %v1469, %v1580
    %v1582 = vlaneseq
    %v1583 = vshrl.u32 %v1582, 7
    %v1584 = vsub.s32 0, %v1583
    %v1585 = vrot.slane %v1477, %v1584
    %v1586 = vlaneseq
    %v1587 = vshrl.u32 %v1586, 7
    %v1588 = vsub.s32 0, %v1587
    %v1589 = vrot.slane %v1476, %v1588
    %v1590 = vlaneseq
    %v1591 = vshrl.u32 %v1590, 7
    %v1592 = vsub.s32 0, %v1591
    %v1593 = vrot.slane %v1478, %v1592
    %v1594 = vsel %vm1511, %v1569, %v1565
    %v1595 = vsel %vm1513, %v1573, %v1594
    %v1596 = vsel %vm1515, %v1577, %v1595
    %v1597 = vsel %vm1517, %v1581, %v1596
    %v1598 = vsel %vm1519, %v1585, %v1597
    %v1599 = vsel %vm1521, %v1589, %v1598
    %v1600 = vsel %vm1523, %v1593, %v1599
    %1602 = vmatprep.subr.mxu0 0.0
    %1603 = vmatpush1.msra.mxu0 %v1546
    %1604 = vmatprep.subr.mxu0 0.0
    %1605 = vmatpush1.msra.mxu0 %v1547
    %1606 = vmatprep.subr.mxu0 0.0
    %1607 = vmatpush1.msra.mxu0 %v1548
    %1608 = vmatprep.subr.mxu0 0.0
    %1609 = vmatpush1.msra.mxu0 %v1549
    %1610 = vmatprep.subr.mxu0 0.0
    %1611 = vmatpush1.msra.mxu0 %v1550
    %1612 = vmatprep.subr.mxu0 0.0
    %1613 = vmatpush1.msra.mxu0 %v1551
    %1614 = vmatprep.subr.mxu0 0.0
    %1615 = vmatpush1.msra.mxu0 %v1552
    %1616 = vmatprep.subr.mxu0 0.0
    %1617 = vmatpush1.msra.mxu0 %v1553
    %1618 = vmatprep.subr.mxu0 0.0
    %1619 = vmatpush1.msra.mxu0 %v1554
    %1620 = vmatprep.subr.mxu0 0.0
    %1621 = vmatpush1.msra.mxu0 %v1555
    %1622 = vmatprep.subr.mxu0 0.0
    %1623 = vmatpush1.msra.mxu0 %v1556
    %1624 = vmatprep.subr.mxu0 0.0
    %1625 = vmatpush1.msra.mxu0 %v1557
    %1626 = vmatprep.subr.mxu0 0.0
    %1627 = vmatpush1.msra.mxu0 %v1558
    %1628 = vmatprep.subr.mxu0 0.0
    %1629 = vmatpush1.msra.mxu0 %v1559
    %1630 = vmatprep.subr.mxu0 0.0
    %1631 = vmatpush1.msra.mxu0 %v1560
    %1632 = vmatprep.subr.mxu0 0.0
    %1633 = vmatpush1.msra.mxu0 %v1561
    %1634 = vmatprep.subr.mxu0 0.0
    %1635 = vmatpush1.msra.mxu0 0.0
    %1636 = vmatprep.subr.mxu0 0.0
    %1637 = vmatpush1.msra.mxu0 0.0
    %1638 = vmatprep.subr.mxu0 0.0
    %1639 = vmatpush1.msra.mxu0 0.0
    %1640 = vmatprep.subr.mxu0 0.0
    %1641 = vmatpush1.msra.mxu0 0.0
    %1642 = vmatprep.subr.mxu0 0.0
    %1643 = vmatpush1.msra.mxu0 0.0
    %1644 = vmatprep.subr.mxu0 0.0
    %1645 = vmatpush1.msra.mxu0 0.0
    %1646 = vmatprep.subr.mxu0 0.0
    %1647 = vmatpush1.msra.mxu0 0.0
    %1648 = vmatprep.subr.mxu0 0.0
    %1649 = vmatpush1.msra.mxu0 0.0
    %1650 = vmatprep.subr.mxu0 0.0
    %1651 = vmatpush1.msra.mxu0 0.0
    %1652 = vmatprep.subr.mxu0 0.0
    %1653 = vmatpush1.msra.mxu0 0.0
    %1654 = vmatprep.subr.mxu0 0.0
    %1655 = vmatpush1.msra.mxu0 0.0
    %1656 = vmatprep.subr.mxu0 0.0
    %1657 = vmatpush1.msra.mxu0 0.0
    %1658 = vmatprep.subr.mxu0 0.0
    %1659 = vmatpush1.msra.mxu0 0.0
    %1660 = vmatprep.subr.mxu0 0.0
    %1661 = vmatpush1.msra.mxu0 0.0
    %1662 = vmatprep.subr.mxu0 0.0
    %1663 = vmatpush1.msra.mxu0 0.0
    %1664 = vmatprep.subr.mxu0 0.0
    %1665 = vmatpush1.msra.mxu0 0.0
    %1666 = vmatprep.mubr.f32.mxu0 0.0
    %1667 = vmatmul.mubr.f32.gmra.mrb[0].mxu0 %v1600
    %v1668 = vpop.f32.mrb[0].mxu0
    %v1669 = vadd.f32 0.0, %v1668
    %v1670 = vpop.f32.mrb[0].mxu0
    %1671 = vdwg.mxu0
    %1672 = vmatprep.subr.mxu0 0.0
    %1673 = vmatpush1.msra.mxu0 %v1529
    %1674 = vmatprep.subr.mxu0 0.0
    %1675 = vmatpush1.msra.mxu0 %v1530
    %1676 = vmatprep.subr.mxu0 0.0
    %1677 = vmatpush1.msra.mxu0 %v1531
    %1678 = vmatprep.subr.mxu0 0.0
    %1679 = vmatpush1.msra.mxu0 %v1532
    %1680 = vmatprep.subr.mxu0 0.0
    %1681 = vmatpush1.msra.mxu0 %v1533
    %1682 = vmatprep.subr.mxu0 0.0
    %1683 = vmatpush1.msra.mxu0 %v1534
    %1684 = vmatprep.subr.mxu0 0.0
    %1685 = vmatpush1.msra.mxu0 %v1535
    %1686 = vmatprep.subr.mxu0 0.0
    %1687 = vmatpush1.msra.mxu0 %v1536
    %1688 = vmatprep.subr.mxu0 0.0
    %1689 = vmatpush1.msra.mxu0 %v1537
    %1690 = vmatprep.subr.mxu0 0.0
    %1691 = vmatpush1.msra.mxu0 %v1538
    %1692 = vmatprep.subr.mxu0 0.0
    %1693 = vmatpush1.msra.mxu0 %v1539
    %1694 = vmatprep.subr.mxu0 0.0
    %1695 = vmatpush1.msra.mxu0 %v1540
    %1696 = vmatprep.subr.mxu0 0.0
    %1697 = vmatpush1.msra.mxu0 %v1541
    %1698 = vmatprep.subr.mxu0 0.0
    %1699 = vmatpush1.msra.mxu0 %v1542
    %1700 = vmatprep.subr.mxu0 0.0
    %1701 = vmatpush1.msra.mxu0 %v1543
    %1702 = vmatprep.subr.mxu0 0.0
    %1703 = vmatpush1.msra.mxu0 %v1544
    %1704 = vmatprep.subr.mxu0 0.0
    %1705 = vmatpush1.msra.mxu0 0.0
    %1706 = vmatprep.subr.mxu0 0.0
    %1707 = vmatpush1.msra.mxu0 0.0
    %1708 = vmatprep.subr.mxu0 0.0
    %1709 = vmatpush1.msra.mxu0 0.0
    %1710 = vmatprep.subr.mxu0 0.0
    %1711 = vmatpush1.msra.mxu0 0.0
    %1712 = vmatprep.subr.mxu0 0.0
    %1713 = vmatpush1.msra.mxu0 0.0
    %1714 = vmatprep.subr.mxu0 0.0
    %1715 = vmatpush1.msra.mxu0 0.0
    %1716 = vmatprep.subr.mxu0 0.0
    %1717 = vmatpush1.msra.mxu0 0.0
    %1718 = vmatprep.subr.mxu0 0.0
    %1719 = vmatpush1.msra.mxu0 0.0
    %1720 = vmatprep.subr.mxu0 0.0
    %1721 = vmatpush1.msra.mxu0 0.0
    %1722 = vmatprep.subr.mxu0 0.0
    %1723 = vmatpush1.msra.mxu0 0.0
    %1724 = vmatprep.subr.mxu0 0.0
    %1725 = vmatpush1.msra.mxu0 0.0
    %1726 = vmatprep.subr.mxu0 0.0
    %1727 = vmatpush1.msra.mxu0 0.0
    %1728 = vmatprep.subr.mxu0 0.0
    %1729 = vmatpush1.msra.mxu0 0.0
    %1730 = vmatprep.subr.mxu0 0.0
    %1731 = vmatpush1.msra.mxu0 0.0
    %1732 = vmatprep.subr.mxu0 0.0
    %1733 = vmatpush1.msra.mxu0 0.0
    %1734 = vmatprep.subr.mxu0 0.0
    %1735 = vmatpush1.msra.mxu0 0.0
    %1736 = vmatprep.mubr.f32.mxu0 0.0
    %1737 = vmatmul.mubr.f32.gmra.mrb[0].mxu0 %v1527
    %v1738 = vpop.f32.mrb[0].mxu0
    %v1739 = vadd.f32 %v1669, %v1738
    %v1740 = vpop.f32.mrb[0].mxu0
    %1741 = vdwg.mxu0
    %s1742 = scalar_lea.vmem [#allocation7], 1920
    %v1743 = vld [vmem:[%s1742] sm:$0xff]
    %v1744 = vld [vmem:[%s1742 + $0x8] sm:$0xff]
    %v1745 = vld [vmem:[%s1742 + $0x10] sm:$0xff]
    %v1746 = vld [vmem:[%s1742 + $0x18] sm:$0xff]
    %v1747 = vld [vmem:[%s1742 + $0x20] sm:$0xff]
    %v1748 = vld [vmem:[%s1742 + $0x28] sm:$0xff]
    %v1749 = vld [vmem:[%s1742 + $0x30] sm:$0xff]
    %v1750 = vld [vmem:[%s1742 + $0x38] sm:$0xff]
    %v1751 = vld [vmem:[%s1742 + $0x40] sm:$0xff]
    %v1752 = vld [vmem:[%s1742 + $0x48] sm:$0xff]
    %v1753 = vld [vmem:[%s1742 + $0x50] sm:$0xff]
    %v1754 = vld [vmem:[%s1742 + $0x58] sm:$0xff]
    %v1755 = vld [vmem:[%s1742 + $0x60] sm:$0xff]
    %v1756 = vld [vmem:[%s1742 + $0x68] sm:$0xff]
    %v1757 = vld [vmem:[%s1742 + $0x70] sm:$0xff]
    %v1758 = vld [vmem:[%s1742 + $0x78] sm:$0xff]
    %1759 = vmatprep.subr.mxu0 0.0
    %1760 = vmatpush1.msra.mxu0 %v1743
    %1761 = vmatprep.subr.mxu0 0.0
    %1762 = vmatpush1.msra.mxu0 %v1744
    %1763 = vmatprep.subr.mxu0 0.0
    %1764 = vmatpush1.msra.mxu0 %v1745
    %1765 = vmatprep.subr.mxu0 0.0
    %1766 = vmatpush1.msra.mxu0 %v1746
    %1767 = vmatprep.subr.mxu0 0.0
    %1768 = vmatpush1.msra.mxu0 %v1747
    %1769 = vmatprep.subr.mxu0 0.0
    %1770 = vmatpush1.msra.mxu0 %v1748
    %1771 = vmatprep.subr.mxu0 0.0
    %1772 = vmatpush1.msra.mxu0 %v1749
    %1773 = vmatprep.subr.mxu0 0.0
    %1774 = vmatpush1.msra.mxu0 %v1750
    %1775 = vmatprep.subr.mxu0 0.0
    %1776 = vmatpush1.msra.mxu0 %v1751
    %1777 = vmatprep.subr.mxu0 0.0
    %1778 = vmatpush1.msra.mxu0 %v1752
    %1779 = vmatprep.subr.mxu0 0.0
    %1780 = vmatpush1.msra.mxu0 %v1753
    %1781 = vmatprep.subr.mxu0 0.0
    %1782 = vmatpush1.msra.mxu0 %v1754
    %1783 = vmatprep.subr.mxu0 0.0
    %1784 = vmatpush1.msra.mxu0 %v1755
    %1785 = vmatprep.subr.mxu0 0.0
    %1786 = vmatpush1.msra.mxu0 %v1756
    %1787 = vmatprep.subr.mxu0 0.0
    %1788 = vmatpush1.msra.mxu0 %v1757
    %1789 = vmatprep.subr.mxu0 0.0
    %1790 = vmatpush1.msra.mxu0 %v1758
    %1791 = vmatprep.subr.mxu0 0.0
    %1792 = vmatpush1.msra.mxu0 0.0
    %1793 = vmatprep.subr.mxu0 0.0
    %1794 = vmatpush1.msra.mxu0 0.0
    %1795 = vmatprep.subr.mxu0 0.0
    %1796 = vmatpush1.msra.mxu0 0.0
    %1797 = vmatprep.subr.mxu0 0.0
    %1798 = vmatpush1.msra.mxu0 0.0
    %1799 = vmatprep.subr.mxu0 0.0
    %1800 = vmatpush1.msra.mxu0 0.0
    %1801 = vmatprep.subr.mxu0 0.0
    %1802 = vmatpush1.msra.mxu0 0.0
    %1803 = vmatprep.subr.mxu0 0.0
    %1804 = vmatpush1.msra.mxu0 0.0
    %1805 = vmatprep.subr.mxu0 0.0
    %1806 = vmatpush1.msra.mxu0 0.0
    %1807 = vmatprep.subr.mxu0 0.0
    %1808 = vmatpush1.msra.mxu0 0.0
    %1809 = vmatprep.subr.mxu0 0.0
    %1810 = vmatpush1.msra.mxu0 0.0
    %1811 = vmatprep.subr.mxu0 0.0
    %1812 = vmatpush1.msra.mxu0 0.0
    %1813 = vmatprep.subr.mxu0 0.0
    %1814 = vmatpush1.msra.mxu0 0.0
    %1815 = vmatprep.subr.mxu0 0.0
    %1816 = vmatpush1.msra.mxu0 0.0
    %1817 = vmatprep.subr.mxu0 0.0
    %1818 = vmatpush1.msra.mxu0 0.0
    %1819 = vmatprep.subr.mxu0 0.0
    %1820 = vmatpush1.msra.mxu0 0.0
    %1821 = vmatprep.subr.mxu0 0.0
    %1822 = vmatpush1.msra.mxu0 0.0
    %1823 = vmatprep.mubr.f32.mxu0 0.0
    %1824 = vmatmul.mubr.f32.gmra.mrb[0].mxu0 %v1524
    %v1825 = vpop.f32.mrb[0].mxu0
    %v1826 = vadd.f32 0.0, %v1825
    %v1827 = vpop.f32.mrb[0].mxu0
    %1828 = vdwg.mxu0
    %v1829 = vadd.f32 %v1739, %v1826
    %v1830 = vlaneseq
    %v1831 = vshrl.u32 %v1830, 7
    %v1832 = vsub.s32 5, %v1831
    %v1833 = vrot.slane %v75, %v1832
    %v1834 = vadd.f32 %v1829, %v1833
    %v1835 = vadd.f32 %v1834, %v1227
    %v1836 = vmax.f32 %v1835, 0.0
    %1837 = vst [vmem:[#allocation11] sm:$0xff] %v1836
    // Predicated region
    $region34: #{hr_module_forward_packed.1} parent=1 // pred_check
      _
    $region35: #{hr_module_forward_packed.1} parent=1 // pred_check_branch
      %1839 = sbr.rel (0) target = $region37
    $region36: #{hr_module_forward_packed.1} parent=1 // pred_region
      %s1841 = ssub.s32 256, 256
      %1842 = vsyncadd [#allocation4], %s1841
      %s1843 = sshll.u32 [#allocation10], 4
      %s1844 = int_to_ptr.vmem [resolvable:$true] %s1843
      %1849 = dma.vmem_to_hbm [thread:$0]  %s1844, 256, %s4, [#allocation4], 128, 128, 8
    $region37: #{hr_module_forward_packed.1} parent=1 // pred_fallthru
      _
    // Predicated region
    $region38: #{hr_module_forward_packed.1} parent=1 // pred_check
      _
    $region39: #{hr_module_forward_packed.1} parent=1 // pred_check_branch
      %1851 = sbr.rel (0) target = $region41
    $region40: #{hr_module_forward_packed.1} parent=1 // pred_region
      %s1853 = ssub.s32 128, 128
      %1854 = vsyncadd [#allocation12], %s1853
      %s1856 = sshll.u32 [#allocation11], 4
      %s1857 = int_to_ptr.vmem [resolvable:$true] %s1856
      %1859 = dma.vmem_to_hbm [thread:$0]  %s1857, 128, %s5, [#allocation12]
    $region41: #{hr_module_forward_packed.1} parent=1 // pred_fallthru
      _
    // Predicated region
    $region42: #{hr_module_forward_packed.1} parent=1 // pred_check
      _
    $region43: #{hr_module_forward_packed.1} parent=1 // pred_check_branch
      %1861 = sbr.rel (0) target = $region45
    $region44: #{hr_module_forward_packed.1} parent=1 // pred_region
      %1862 = dma.done [#allocation4], 256
    $region45: #{hr_module_forward_packed.1} parent=1 // pred_fallthru
      _
    // Predicated region
    $region46: #{hr_module_forward_packed.1} parent=1 // pred_check
      _
    $region47: #{hr_module_forward_packed.1} parent=1 // pred_check_branch
      %1864 = sbr.rel (0) target = $region49
    $region48: #{hr_module_forward_packed.1} parent=1 // pred_region
      %1865 = dma.done [#allocation12], 128
    $region49: #{hr_module_forward_packed.1} parent=1 // pred_fallthru
      _
    %1866 = vsyncpa [#allocation3], 1
    %1867 = vsyncpa [#allocation6], 1
    %1868 = vsyncpa [#allocation9], 1
    %1869 = vsyncpa [#allocation4], 1
    %1870 = vsyncpa [#allocation12], 1

</llo_original>
